<compile_context>
chip_gen: v5e
topology: v5e:2x2
jax: 0.10.0
libtpu: 0.0.40
codegen_flags: <defaults>
</compile_context>

<pallas_src>
import jax
import jax.numpy as jnp
from jax.experimental import pallas as pl
from jax.experimental.pallas import tpu as pltpu

F_IN = 3601          # model input features (kept unpadded end to end)
HID = 64


def _round_up(n, m):
    return ((n + m - 1) // m) * m


def mlp_kernel(x_ref, w1_ref, b1_ref, w2_ref, b2_ref, w3r_ref, b3_ref, o_ref):
    # layer 1: (tb, 3601) @ (3601, 64) -> (tb, 64), ReLU.
    # K = 3601 is padded/masked by Mosaic inside VMEM; accumulation is f32.
    h = jnp.dot(x_ref[...], w1_ref[...], preferred_element_type=jnp.float32)
    h = jnp.maximum(h + b1_ref[...], 0.0)
    # layer 2: (tb, 64) @ (64, 64) -> (tb, 64), ReLU
    h = jnp.dot(h, w2_ref[...], preferred_element_type=jnp.float32)
    h = jnp.maximum(h + b2_ref[...], 0.0)
    # layer 3: out_features == 1 -> VPU multiply + cross-lane reduction, ReLU
    h = jnp.sum(h * w3r_ref[...], axis=-1, keepdims=True)          # (tb, 1)
    h = jnp.maximum(h + b3_ref[...], 0.0)
    # sigmoid epilogue; only the real output column exists.
    o_ref[...] = jax.nn.sigmoid(h).astype(o_ref.dtype)


def _vmem_capacity_bytes():
    try:
        return int(pltpu.get_tpu_info().vmem_capacity_bytes)
    except Exception:
        return 64 << 20   # conservative default: v7x physical VMEM (< v5e/v6e)


def _pick_tile(x_itemsize, vmem_cap):
    """Largest batch tile whose double-buffered x stream + resident weights fit."""
    budget = int(0.55 * vmem_cap)                     # headroom for Mosaic scratch
    fixed = 2 * (F_IN * HID * x_itemsize              # w1 (double-buffered)
                 + HID * HID * 4 + 3 * HID * 4 + 4)   # w2, b1, b2, w3r, b3
    per_row = 2 * F_IN * x_itemsize + 2 * 4           # x tile (x2 buffers) + out row
    tb = (budget - fixed) // per_row
    tb = max(128, min(2048, (tb // 128) * 128))
    return int(tb)


def _forward(x, w1, b1, w2, b2, w3r, b3, *, tb, grid, vmem_limit):
    B_pad = x.shape[0]
    wspec = lambda a: pl.BlockSpec(a.shape, lambda i: (0, 0))   # grid-invariant
    return pl.pallas_call(
        mlp_kernel,
        out_shape=jax.ShapeDtypeStruct((B_pad, 1), jnp.float32),
        grid_spec=pltpu.PrefetchScalarGridSpec(
            num_scalar_prefetch=0,
            grid=(grid,),
            in_specs=[
                pl.BlockSpec((tb, F_IN), lambda i: (i, 0)),     # streamed x tile
                wspec(w1), wspec(b1), wspec(w2), wspec(b2),
                wspec(w3r), wspec(b3),
            ],
            out_specs=pl.BlockSpec((tb, 1), lambda i: (i, 0)),
        ),
        compiler_params=pltpu.CompilerParams(
            dimension_semantics=("parallel",),     # batch axis: megacore-shardable
            vmem_limit_bytes=vmem_limit),
    )(x, w1, b1, w2, b2, w3r, b3)


def mlp_regression(x, params, *, tb=None):
    """x: (B, 3601) float32 (or bfloat16). Returns (B,) float32 = sigmoid(mlp(x))[:, 0]."""
    w1, b1, w2, b2, w3, b3 = params
    B, F = x.shape
    assert F == F_IN

    # bf16 streaming only if the caller already holds bf16 x; never cast f32 x here.
    if x.dtype == jnp.bfloat16:
        w1 = w1.astype(jnp.bfloat16)
    else:
        x = x.astype(jnp.float32)

    w3r = jnp.reshape(w3, (1, HID))     # (64, 1) -> (1, 64) for the lane reduction
    b3r = jnp.reshape(b3, (1, 1))

    vmem_cap = _vmem_capacity_bytes()
    vmem_limit = int(0.75 * vmem_cap)
    tb_max = _pick_tile(jnp.dtype(x.dtype).itemsize, vmem_cap)
    if tb is not None:
        tb_max = max(8, min(_round_up(int(tb), 8), tb_max))

    if B <= tb_max:
        if B >= 256 and B % 16 == 0:
            tb_eff, grid = B // 2, 2    # two tiles -> v7x's two TCs split the grid
        else:
            tb_eff, grid = B, 1         # one full-array block (exempt from (8,128))
        x_run = x
    elif B % tb_max == 0:
        tb_eff, grid, x_run = tb_max, B // tb_max, x
    else:
        # rare: large ragged batch -> one batch zero-pad copy (feature dim stays unpadded)
        B_pad = _round_up(B, tb_max)
        x_run = jnp.pad(x, ((0, B_pad - B), (0, 0)))
        tb_eff, grid = tb_max, B_pad // tb_max

    out = _forward(x_run, w1, b1, w2, b2, w3r, b3r,
                   tb=tb_eff, grid=grid, vmem_limit=vmem_limit)
    return out[:B, 0]                    # free reshape on a (B, 1) array


def init_params(key):
    """PyTorch-style nn.Linear init: U(-1/sqrt(fan_in), 1/sqrt(fan_in))."""
    def linear(key, fan_in, fan_out):
        kw, kb = jax.random.split(key)
        bound = 1.0 / jnp.sqrt(jnp.float32(fan_in))
        # stored as (in, out) so the kernel computes x @ W (== PyTorch x @ W.T)
        w = jax.random.uniform(kw, (fan_in, fan_out), jnp.float32, -bound, bound)
        b = jax.random.uniform(kb, (1, fan_out), jnp.float32, -bound, bound)
        return w, b

    k1, k2, k3 = jax.random.split(key, 3)
    w1, b1 = linear(k1, 3601, 64)
    w2, b2 = linear(k2, 64, 64)
    w3, b3 = linear(k3, 64, 1)
    return (w1, b1, w2, b2, w3, b3)


def reference(x, params):
    w1, b1, w2, b2, w3, b3 = params
    h = jax.nn.relu(x @ w1 + b1)
    h = jax.nn.relu(h @ w2 + b2)
    h = jax.nn.relu(h @ w3 + b3)
    return jax.nn.sigmoid(h)[:, 0]


if __name__ == "__main__":
    key = jax.random.PRNGKey(0)
    kp, kx = jax.random.split(key)
    params = init_params(kp)

    B = 16
    x = jax.random.normal(kx, (B, F_IN), jnp.float32)
    y_ref = reference(x, params)

    # default path: single full-batch block, no padding anywhere.
    y = jax.block_until_ready(mlp_regression(x, params))
    assert y.shape == (B,)
    assert jnp.allclose(y, y_ref, atol=2e-5, rtol=2e-5), (y, y_ref)

    # tiled path (grid > 1): force a tiny tile.
    y_t = jax.block_until_ready(mlp_regression(x, params, tb=8))
    assert jnp.allclose(y_t, y_ref, atol=2e-5, rtol=2e-5)

    # ragged batch smaller than a tile: full-array block with B=13 (exempt dims).
    y13 = jax.block_until_ready(mlp_regression(x[:13], params))
    assert y13.shape == (13,)
    assert jnp.allclose(y13, y_ref[:13], atol=2e-5, rtol=2e-5)

    # large-ragged fallback (batch zero-pad + slice), forced via a tiny tile.
    y13t = jax.block_until_ready(mlp_regression(x[:13], params, tb=8))
    assert jnp.allclose(y13t, y_ref[:13], atol=2e-5, rtol=2e-5)

    # bf16 streaming path (only used when the caller already holds bf16 x).
    y_bf16 = jax.block_until_ready(mlp_regression(x.astype(jnp.bfloat16), params))
    assert jnp.allclose(y_bf16, y_ref, atol=2e-2, rtol=2e-2)

    print("KERNEL_OK")
</pallas_src>

<mosaic_0001>
module attributes {stable_mosaic.version = 11 : i64} {
  func.func @mlp_kernel(%arg0: i32, %arg1: memref<16x3601xf32, #tpu.memory_space<vmem>>, %arg2: memref<3601x64xf32, #tpu.memory_space<vmem>>, %arg3: memref<1x64xf32, #tpu.memory_space<vmem>>, %arg4: memref<64x64xf32, #tpu.memory_space<vmem>>, %arg5: memref<1x64xf32, #tpu.memory_space<vmem>>, %arg6: memref<1x64xf32, #tpu.memory_space<vmem>>, %arg7: memref<1x1xf32, #tpu.memory_space<vmem>>, %arg8: memref<16x1xf32, #tpu.memory_space<vmem>>) attributes {dimension_semantics = [#tpu.dimension_semantics<parallel>], iteration_bounds = array<i64: 1>, scalar_prefetch = 0 : i64, scratch_operands = 0 : i64, tpu.core_type = #tpu.core_type<tc>, window_params = [{transform_indices = @transform_0, window_bounds = array<i64: 16, 3601>}, {pipeline_mode = #tpu.pipeline_mode<synchronous>, transform_indices = @transform_1, window_bounds = array<i64: 3601, 64>}, {pipeline_mode = #tpu.pipeline_mode<synchronous>, transform_indices = @transform_2, window_bounds = array<i64: 1, 64>}, {pipeline_mode = #tpu.pipeline_mode<synchronous>, transform_indices = @transform_3, window_bounds = array<i64: 64, 64>}, {pipeline_mode = #tpu.pipeline_mode<synchronous>, transform_indices = @transform_4, window_bounds = array<i64: 1, 64>}, {pipeline_mode = #tpu.pipeline_mode<synchronous>, transform_indices = @transform_5, window_bounds = array<i64: 1, 64>}, {pipeline_mode = #tpu.pipeline_mode<synchronous>, transform_indices = @transform_6, window_bounds = array<i64: 1, 1>}, {transform_indices = @transform_7, window_bounds = array<i64: 16, 1>}]} {
    %c0 = arith.constant 0 : index
    %c0_0 = arith.constant 0 : index
    %0 = vector.load %arg1[%c0, %c0_0] : memref<16x3601xf32, #tpu.memory_space<vmem>>, vector<16x3601xf32>
    %c0_1 = arith.constant 0 : index
    %c0_2 = arith.constant 0 : index
    %1 = vector.load %arg2[%c0_1, %c0_2] : memref<3601x64xf32, #tpu.memory_space<vmem>>, vector<3601x64xf32>
    %cst = arith.constant dense<0.000000e+00> : vector<16x64xf32>
    %2 = tpu.matmul %0, %1, %cst {dimension_numbers = #tpu.dot_dimension_numbers<[1], [0], [0], [1], [0, 0, 1, 1], [], []>} : vector<16x3601xf32>, vector<3601x64xf32>, vector<16x64xf32> -> vector<16x64xf32>
    %c0_3 = arith.constant 0 : index
    %c0_4 = arith.constant 0 : index
    %3 = vector.load %arg3[%c0_3, %c0_4] : memref<1x64xf32, #tpu.memory_space<vmem>>, vector<1x64xf32>
    %4 = vector.broadcast %3 : vector<1x64xf32> to vector<16x64xf32>
    %5 = arith.addf %2, %4 : vector<16x64xf32>
    %cst_5 = arith.constant 0.000000e+00 : f32
    %6 = vector.broadcast %cst_5 : f32 to vector<16x64xf32>
    %7 = arith.maximumf %5, %6 : vector<16x64xf32>
    %c0_6 = arith.constant 0 : index
    %c0_7 = arith.constant 0 : index
    %8 = vector.load %arg4[%c0_6, %c0_7] : memref<64x64xf32, #tpu.memory_space<vmem>>, vector<64x64xf32>
    %cst_8 = arith.constant dense<0.000000e+00> : vector<16x64xf32>
    %9 = tpu.matmul %7, %8, %cst_8 {dimension_numbers = #tpu.dot_dimension_numbers<[1], [0], [0], [1], [0, 0, 1, 1], [], []>} : vector<16x64xf32>, vector<64x64xf32>, vector<16x64xf32> -> vector<16x64xf32>
    %c0_9 = arith.constant 0 : index
    %c0_10 = arith.constant 0 : index
    %10 = vector.load %arg5[%c0_9, %c0_10] : memref<1x64xf32, #tpu.memory_space<vmem>>, vector<1x64xf32>
    %11 = vector.broadcast %10 : vector<1x64xf32> to vector<16x64xf32>
    %12 = arith.addf %9, %11 : vector<16x64xf32>
    %cst_11 = arith.constant 0.000000e+00 : f32
    %13 = vector.broadcast %cst_11 : f32 to vector<16x64xf32>
    %14 = arith.maximumf %12, %13 : vector<16x64xf32>
    %c0_12 = arith.constant 0 : index
    %c0_13 = arith.constant 0 : index
    %15 = vector.load %arg6[%c0_12, %c0_13] : memref<1x64xf32, #tpu.memory_space<vmem>>, vector<1x64xf32>
    %16 = vector.broadcast %15 : vector<1x64xf32> to vector<16x64xf32>
    %17 = arith.mulf %14, %16 : vector<16x64xf32>
    %cst_14 = arith.constant dense<0.000000e+00> : vector<16xf32>
    %18 = vector.multi_reduction <add>, %17, %cst_14 [1] : vector<16x64xf32> to vector<16xf32>
    %19 = vector.shape_cast %18 : vector<16xf32> to vector<16x1xf32>
    %c0_15 = arith.constant 0 : index
    %c0_16 = arith.constant 0 : index
    %20 = vector.load %arg7[%c0_15, %c0_16] : memref<1x1xf32, #tpu.memory_space<vmem>>, vector<1x1xf32>
    %21 = vector.broadcast %20 : vector<1x1xf32> to vector<16x1xf32>
    %22 = arith.addf %19, %21 : vector<16x1xf32>
    %cst_17 = arith.constant 0.000000e+00 : f32
    %23 = vector.broadcast %cst_17 : f32 to vector<16x1xf32>
    %24 = arith.maximumf %22, %23 : vector<16x1xf32>
    %25 = arith.negf %24 : vector<16x1xf32>
    %26 = math.exp %25 : vector<16x1xf32>
    %cst_18 = arith.constant 1.000000e+00 : f32
    %27 = vector.broadcast %cst_18 : f32 to vector<16x1xf32>
    %28 = arith.addf %27, %26 : vector<16x1xf32>
    %29 = arith.divf %27, %28 : vector<16x1xf32>
    %c0_19 = arith.constant 0 : index
    %c0_20 = arith.constant 0 : index
    %30 = vector.load %arg8[%c0_19, %c0_20] : memref<16x1xf32, #tpu.memory_space<vmem>>, vector<16x1xf32>
    tpu.vector_store %arg8[%c0_19, %c0_20], %29 {strides = array<i32>} : memref<16x1xf32, #tpu.memory_space<vmem>>, vector<16x1xf32>,
    return
  }
  func.func @transform_0(%arg0: i32) -> (i32, i32) {
    %c0_i32 = arith.constant 0 : i32
    %c0_i32_0 = arith.constant 0 : i32
    return %arg0, %c0_i32 : i32, i32
  }
  func.func @transform_1(%arg0: i32) -> (i32, i32) {
    %c0_i32 = arith.constant 0 : i32
    %c0_i32_0 = arith.constant 0 : i32
    %c0_i32_1 = arith.constant 0 : i32
    return %c0_i32, %c0_i32_0 : i32, i32
  }
  func.func @transform_2(%arg0: i32) -> (i32, i32) {
    %c0_i32 = arith.constant 0 : i32
    %c0_i32_0 = arith.constant 0 : i32
    %c0_i32_1 = arith.constant 0 : i32
    return %c0_i32, %c0_i32_0 : i32, i32
  }
  func.func @transform_3(%arg0: i32) -> (i32, i32) {
    %c0_i32 = arith.constant 0 : i32
    %c0_i32_0 = arith.constant 0 : i32
    %c0_i32_1 = arith.constant 0 : i32
    return %c0_i32, %c0_i32_0 : i32, i32
  }
  func.func @transform_4(%arg0: i32) -> (i32, i32) {
    %c0_i32 = arith.constant 0 : i32
    %c0_i32_0 = arith.constant 0 : i32
    %c0_i32_1 = arith.constant 0 : i32
    return %c0_i32, %c0_i32_0 : i32, i32
  }
  func.func @transform_5(%arg0: i32) -> (i32, i32) {
    %c0_i32 = arith.constant 0 : i32
    %c0_i32_0 = arith.constant 0 : i32
    %c0_i32_1 = arith.constant 0 : i32
    return %c0_i32, %c0_i32_0 : i32, i32
  }
  func.func @transform_6(%arg0: i32) -> (i32, i32) {
    %c0_i32 = arith.constant 0 : i32
    %c0_i32_0 = arith.constant 0 : i32
    %c0_i32_1 = arith.constant 0 : i32
    return %c0_i32, %c0_i32_0 : i32, i32
  }
  func.func @transform_7(%arg0: i32) -> (i32, i32) {
    %c0_i32 = arith.constant 0 : i32
    %c0_i32_0 = arith.constant 0 : i32
    return %arg0, %c0_i32 : i32, i32
  }
}

</mosaic_0001>

<llo_original>
// kernel: tpu_custom_call.1
$region0: #{tpu_custom_call.1}
  #allocation0 [shape = 'u32[]', space=smem, size = 0x4, offset = 0x4, fixed_abs, tag = 'smem constant byte address 0x4 - core index']
  #allocation1 [shape = 'u32[72,128]{1,0:T(1,128)}', space=vmem, size = 0x9000, scoped, tag = 'internal scratch']
  #allocation2 [shape = 'f32[1,1]{1,0:T(1,128)S(1)}', space=vmem, size = 0x200, scoped, tag = 'scoped memory for tpu_custom_call.1']
  %s0 = inlined_call_operand.vmem [shape: f32[16,3601], index: 0, kind: input, shape index: {}]
  %s1 = inlined_call_operand.vmem [shape: f32[3601,64], index: 1, kind: input, shape index: {}]
  %s2 = inlined_call_operand.vmem [shape: f32[1,64], index: 2, kind: input, shape index: {}]
  %s3 = inlined_call_operand.vmem [shape: f32[64,64], index: 3, kind: input, shape index: {}]
  %s4 = inlined_call_operand.vmem [shape: f32[1,64], index: 4, kind: input, shape index: {}]
  %s5 = inlined_call_operand.vmem [shape: f32[1,64], index: 5, kind: input, shape index: {}]
  %s6 = inlined_call_operand.<no memory space> [shape: f32[1,1], index: 6, kind: input, shape index: {}]
  %s7 = inlined_call_operand.vmem [shape: f32[16,1], index: 7, kind: output, shape index: {}]
  %s8 = sld [smem:[#allocation0]]
  $region38: #{tpu_custom_call.1} parent=0
    _
  %s10 = ssub.s32 1, %s8
  %s11 = scalar_select 0, %s10, %s8
  %v12 = vstv %s6
  %13 = vst [vmem:[#allocation2] sm:$0x1] %v12
  // Predicated region
  $region2: #{tpu_custom_call.1} parent=0 // pred_check
    _
  $region3: #{tpu_custom_call.1} parent=0 // pred_check_branch
    %15 = sbr.rel (0) target = $region5
  $region4: #{tpu_custom_call.1} parent=0 // pred_region
    _
  $region5: #{tpu_custom_call.1} parent=0 // pred_fallthru
    _
  // Predicated region
  $region6: #{tpu_custom_call.1} parent=0 // pred_check
    _
  $region7: #{tpu_custom_call.1} parent=0 // pred_check_branch
    %17 = sbr.rel (0) target = $region9
  $region8: #{tpu_custom_call.1} parent=0 // pred_region
    _
  $region9: #{tpu_custom_call.1} parent=0 // pred_fallthru
    _
  // Predicated region
  $region10: #{tpu_custom_call.1} parent=0 // pred_check
    _
  $region11: #{tpu_custom_call.1} parent=0 // pred_check_branch
    %19 = sbr.rel (0) target = $region13
  $region12: #{tpu_custom_call.1} parent=0 // pred_region
    _
  $region13: #{tpu_custom_call.1} parent=0 // pred_fallthru
    _
  // Predicated region
  $region14: #{tpu_custom_call.1} parent=0 // pred_check
    _
  $region15: #{tpu_custom_call.1} parent=0 // pred_check_branch
    %21 = sbr.rel (0) target = $region17
  $region16: #{tpu_custom_call.1} parent=0 // pred_region
    _
  $region17: #{tpu_custom_call.1} parent=0 // pred_fallthru
    _
  // Predicated region
  $region18: #{tpu_custom_call.1} parent=0 // pred_check
    _
  $region19: #{tpu_custom_call.1} parent=0 // pred_check_branch
    %23 = sbr.rel (0) target = $region21
  $region20: #{tpu_custom_call.1} parent=0 // pred_region
    _
  $region21: #{tpu_custom_call.1} parent=0 // pred_fallthru
    _
  // Predicated region
  $region22: #{tpu_custom_call.1} parent=0 // pred_check
    _
  $region23: #{tpu_custom_call.1} parent=0 // pred_check_branch
    %25 = sbr.rel (0) target = $region25
  $region24: #{tpu_custom_call.1} parent=0 // pred_region
    _
  $region25: #{tpu_custom_call.1} parent=0 // pred_fallthru
    _
  // Predicated region
  $region26: #{tpu_custom_call.1} parent=0 // pred_check
    _
  $region27: #{tpu_custom_call.1} parent=0 // pred_check_branch
    %27 = sbr.rel (0) target = $region29
  $region28: #{tpu_custom_call.1} parent=0 // pred_region
    _
  $region29: #{tpu_custom_call.1} parent=0 // pred_fallthru
    _
  %v28 = vld [vmem:[%s0] sm:$0xff]
  %v29 = vld [vmem:[%s0 + $0x8] sm:$0xff]
  %v30 = vld [vmem:[%s0 + $0x10] sm:$0xff]
  %v31 = vld [vmem:[%s0 + $0x18] sm:$0xff]
  %v32 = vld [vmem:[%s0 + $0x20] sm:$0xff]
  %v33 = vld [vmem:[%s0 + $0x28] sm:$0xff]
  %v34 = vld [vmem:[%s0 + $0x30] sm:$0xff]
  %v35 = vld [vmem:[%s0 + $0x38] sm:$0xff]
  %v36 = vld [vmem:[%s0 + $0x40] sm:$0xff]
  %v37 = vld [vmem:[%s0 + $0x48] sm:$0xff]
  %v38 = vld [vmem:[%s0 + $0x50] sm:$0xff]
  %v39 = vld [vmem:[%s0 + $0x58] sm:$0xff]
  %v40 = vld [vmem:[%s0 + $0x60] sm:$0xff]
  %v41 = vld [vmem:[%s0 + $0x68] sm:$0xff]
  %v42 = vld [vmem:[%s0 + $0x70] sm:$0xff]
  %v43 = vld [vmem:[%s0 + $0x78] sm:$0xff]
  %v44 = vld [vmem:[%s0 + $0x80] sm:$0xff]
  %v45 = vld [vmem:[%s0 + $0x88] sm:$0xff]
  %v46 = vld [vmem:[%s0 + $0x90] sm:$0xff]
  %v47 = vld [vmem:[%s0 + $0x98] sm:$0xff]
  %v48 = vld [vmem:[%s0 + $0xa0] sm:$0xff]
  %v49 = vld [vmem:[%s0 + $0xa8] sm:$0xff]
  %v50 = vld [vmem:[%s0 + $0xb0] sm:$0xff]
  %v51 = vld [vmem:[%s0 + $0xb8] sm:$0xff]
  %v52 = vld [vmem:[%s0 + $0xc0] sm:$0xff]
  %v53 = vld [vmem:[%s0 + $0xc8] sm:$0xff]
  %v54 = vld [vmem:[%s0 + $0xd0] sm:$0xff]
  %v55 = vld [vmem:[%s0 + $0xd8] sm:$0xff]
  %v56 = vld [vmem:[%s0 + $0xe0] sm:$0xff]
  %v57 = vld [vmem:[%s0 + $0xe8] sm:$0xff]
  %v58 = vld [vmem:[%s0 + $0xf0] sm:$0xff]
  %v59 = vld [vmem:[%s0 + $0xf8] sm:$0xff]
  %v60 = vld [vmem:[%s0 + $0x100] sm:$0xff]
  %v61 = vld [vmem:[%s0 + $0x108] sm:$0xff]
  %v62 = vld [vmem:[%s0 + $0x110] sm:$0xff]
  %v63 = vld [vmem:[%s0 + $0x118] sm:$0xff]
  %v64 = vld [vmem:[%s0 + $0x120] sm:$0xff]
  %v65 = vld [vmem:[%s0 + $0x128] sm:$0xff]
  %v66 = vld [vmem:[%s0 + $0x130] sm:$0xff]
  %v67 = vld [vmem:[%s0 + $0x138] sm:$0xff]
  %v68 = vld [vmem:[%s0 + $0x140] sm:$0xff]
  %v69 = vld [vmem:[%s0 + $0x148] sm:$0xff]
  %v70 = vld [vmem:[%s0 + $0x150] sm:$0xff]
  %v71 = vld [vmem:[%s0 + $0x158] sm:$0xff]
  %v72 = vld [vmem:[%s0 + $0x160] sm:$0xff]
  %v73 = vld [vmem:[%s0 + $0x168] sm:$0xff]
  %v74 = vld [vmem:[%s0 + $0x170] sm:$0xff]
  %v75 = vld [vmem:[%s0 + $0x178] sm:$0xff]
  %v76 = vld [vmem:[%s0 + $0x180] sm:$0xff]
  %v77 = vld [vmem:[%s0 + $0x188] sm:$0xff]
  %v78 = vld [vmem:[%s0 + $0x190] sm:$0xff]
  %v79 = vld [vmem:[%s0 + $0x198] sm:$0xff]
  %v80 = vld [vmem:[%s0 + $0x1a0] sm:$0xff]
  %v81 = vld [vmem:[%s0 + $0x1a8] sm:$0xff]
  %v82 = vld [vmem:[%s0 + $0x1b0] sm:$0xff]
  %v83 = vld [vmem:[%s0 + $0x1b8] sm:$0xff]
  %v84 = vld [vmem:[%s0 + $0x1c0] sm:$0xff]
  %v85 = vld [vmem:[%s0 + $0x1c8] sm:$0xff]
  %v86 = vld [vmem:[%s1] sm:$0xff]
  %v87 = vld [vmem:[%s1 + $0x8] sm:$0xff]
  %v88 = vld [vmem:[%s1 + $0x10] sm:$0xff]
  %v89 = vld [vmem:[%s1 + $0x18] sm:$0xff]
  %v90 = vld [vmem:[%s1 + $0x20] sm:$0xff]
  %v91 = vld [vmem:[%s1 + $0x28] sm:$0xff]
  %v92 = vld [vmem:[%s1 + $0x30] sm:$0xff]
  %v93 = vld [vmem:[%s1 + $0x38] sm:$0xff]
  %v94 = vld [vmem:[%s1 + $0x40] sm:$0xff]
  %v95 = vld [vmem:[%s1 + $0x48] sm:$0xff]
  %v96 = vld [vmem:[%s1 + $0x50] sm:$0xff]
  %v97 = vld [vmem:[%s1 + $0x58] sm:$0xff]
  %v98 = vld [vmem:[%s1 + $0x60] sm:$0xff]
  %v99 = vld [vmem:[%s1 + $0x68] sm:$0xff]
  %v100 = vld [vmem:[%s1 + $0x70] sm:$0xff]
  %v101 = vld [vmem:[%s1 + $0x78] sm:$0xff]
  %v102 = vld [vmem:[%s1 + $0x80] sm:$0xff]
  %v103 = vld [vmem:[%s1 + $0x88] sm:$0xff]
  %v104 = vld [vmem:[%s1 + $0x90] sm:$0xff]
  %v105 = vld [vmem:[%s1 + $0x98] sm:$0xff]
  %v106 = vld [vmem:[%s1 + $0xa0] sm:$0xff]
  %v107 = vld [vmem:[%s1 + $0xa8] sm:$0xff]
  %v108 = vld [vmem:[%s1 + $0xb0] sm:$0xff]
  %v109 = vld [vmem:[%s1 + $0xb8] sm:$0xff]
  %v110 = vld [vmem:[%s1 + $0xc0] sm:$0xff]
  %v111 = vld [vmem:[%s1 + $0xc8] sm:$0xff]
  %v112 = vld [vmem:[%s1 + $0xd0] sm:$0xff]
  %v113 = vld [vmem:[%s1 + $0xd8] sm:$0xff]
  %v114 = vld [vmem:[%s1 + $0xe0] sm:$0xff]
  %v115 = vld [vmem:[%s1 + $0xe8] sm:$0xff]
  %v116 = vld [vmem:[%s1 + $0xf0] sm:$0xff]
  %v117 = vld [vmem:[%s1 + $0xf8] sm:$0xff]
  %v118 = vld [vmem:[%s1 + $0x100] sm:$0xff]
  %v119 = vld [vmem:[%s1 + $0x108] sm:$0xff]
  %v120 = vld [vmem:[%s1 + $0x110] sm:$0xff]
  %v121 = vld [vmem:[%s1 + $0x118] sm:$0xff]
  %v122 = vld [vmem:[%s1 + $0x120] sm:$0xff]
  %v123 = vld [vmem:[%s1 + $0x128] sm:$0xff]
  %v124 = vld [vmem:[%s1 + $0x130] sm:$0xff]
  %v125 = vld [vmem:[%s1 + $0x138] sm:$0xff]
  %v126 = vld [vmem:[%s1 + $0x140] sm:$0xff]
  %v127 = vld [vmem:[%s1 + $0x148] sm:$0xff]
  %v128 = vld [vmem:[%s1 + $0x150] sm:$0xff]
  %v129 = vld [vmem:[%s1 + $0x158] sm:$0xff]
  %v130 = vld [vmem:[%s1 + $0x160] sm:$0xff]
  %v131 = vld [vmem:[%s1 + $0x168] sm:$0xff]
  %v132 = vld [vmem:[%s1 + $0x170] sm:$0xff]
  %v133 = vld [vmem:[%s1 + $0x178] sm:$0xff]
  %v134 = vld [vmem:[%s1 + $0x180] sm:$0xff]
  %v135 = vld [vmem:[%s1 + $0x188] sm:$0xff]
  %v136 = vld [vmem:[%s1 + $0x190] sm:$0xff]
  %v137 = vld [vmem:[%s1 + $0x198] sm:$0xff]
  %v138 = vld [vmem:[%s1 + $0x1a0] sm:$0xff]
  %v139 = vld [vmem:[%s1 + $0x1a8] sm:$0xff]
  %v140 = vld [vmem:[%s1 + $0x1b0] sm:$0xff]
  %v141 = vld [vmem:[%s1 + $0x1b8] sm:$0xff]
  %v142 = vld [vmem:[%s1 + $0x1c0] sm:$0xff]
  %v143 = vld [vmem:[%s1 + $0x1c8] sm:$0xff]
  %v144 = vld [vmem:[%s1 + $0x1d0] sm:$0xff]
  %v145 = vld [vmem:[%s1 + $0x1d8] sm:$0xff]
  %v146 = vld [vmem:[%s1 + $0x1e0] sm:$0xff]
  %v147 = vld [vmem:[%s1 + $0x1e8] sm:$0xff]
  %v148 = vld [vmem:[%s1 + $0x1f0] sm:$0xff]
  %v149 = vld [vmem:[%s1 + $0x1f8] sm:$0xff]
  %v150 = vld [vmem:[%s1 + $0x200] sm:$0xff]
  %v151 = vld [vmem:[%s1 + $0x208] sm:$0xff]
  %v152 = vld [vmem:[%s1 + $0x210] sm:$0xff]
  %v153 = vld [vmem:[%s1 + $0x218] sm:$0xff]
  %v154 = vld [vmem:[%s1 + $0x220] sm:$0xff]
  %v155 = vld [vmem:[%s1 + $0x228] sm:$0xff]
  %v156 = vld [vmem:[%s1 + $0x230] sm:$0xff]
  %v157 = vld [vmem:[%s1 + $0x238] sm:$0xff]
  %v158 = vld [vmem:[%s1 + $0x240] sm:$0xff]
  %v159 = vld [vmem:[%s1 + $0x248] sm:$0xff]
  %v160 = vld [vmem:[%s1 + $0x250] sm:$0xff]
  %v161 = vld [vmem:[%s1 + $0x258] sm:$0xff]
  %v162 = vld [vmem:[%s1 + $0x260] sm:$0xff]
  %v163 = vld [vmem:[%s1 + $0x268] sm:$0xff]
  %v164 = vld [vmem:[%s1 + $0x270] sm:$0xff]
  %v165 = vld [vmem:[%s1 + $0x278] sm:$0xff]
  %v166 = vld [vmem:[%s1 + $0x280] sm:$0xff]
  %v167 = vld [vmem:[%s1 + $0x288] sm:$0xff]
  %v168 = vld [vmem:[%s1 + $0x290] sm:$0xff]
  %v169 = vld [vmem:[%s1 + $0x298] sm:$0xff]
  %v170 = vld [vmem:[%s1 + $0x2a0] sm:$0xff]
  %v171 = vld [vmem:[%s1 + $0x2a8] sm:$0xff]
  %v172 = vld [vmem:[%s1 + $0x2b0] sm:$0xff]
  %v173 = vld [vmem:[%s1 + $0x2b8] sm:$0xff]
  %v174 = vld [vmem:[%s1 + $0x2c0] sm:$0xff]
  %v175 = vld [vmem:[%s1 + $0x2c8] sm:$0xff]
  %v176 = vld [vmem:[%s1 + $0x2d0] sm:$0xff]
  %v177 = vld [vmem:[%s1 + $0x2d8] sm:$0xff]
  %v178 = vld [vmem:[%s1 + $0x2e0] sm:$0xff]
  %v179 = vld [vmem:[%s1 + $0x2e8] sm:$0xff]
  %v180 = vld [vmem:[%s1 + $0x2f0] sm:$0xff]
  %v181 = vld [vmem:[%s1 + $0x2f8] sm:$0xff]
  %v182 = vld [vmem:[%s1 + $0x300] sm:$0xff]
  %v183 = vld [vmem:[%s1 + $0x308] sm:$0xff]
  %v184 = vld [vmem:[%s1 + $0x310] sm:$0xff]
  %v185 = vld [vmem:[%s1 + $0x318] sm:$0xff]
  %v186 = vld [vmem:[%s1 + $0x320] sm:$0xff]
  %v187 = vld [vmem:[%s1 + $0x328] sm:$0xff]
  %v188 = vld [vmem:[%s1 + $0x330] sm:$0xff]
  %v189 = vld [vmem:[%s1 + $0x338] sm:$0xff]
  %v190 = vld [vmem:[%s1 + $0x340] sm:$0xff]
  %v191 = vld [vmem:[%s1 + $0x348] sm:$0xff]
  %v192 = vld [vmem:[%s1 + $0x350] sm:$0xff]
  %v193 = vld [vmem:[%s1 + $0x358] sm:$0xff]
  %v194 = vld [vmem:[%s1 + $0x360] sm:$0xff]
  %v195 = vld [vmem:[%s1 + $0x368] sm:$0xff]
  %v196 = vld [vmem:[%s1 + $0x370] sm:$0xff]
  %v197 = vld [vmem:[%s1 + $0x378] sm:$0xff]
  %v198 = vld [vmem:[%s1 + $0x380] sm:$0xff]
  %v199 = vld [vmem:[%s1 + $0x388] sm:$0xff]
  %v200 = vld [vmem:[%s1 + $0x390] sm:$0xff]
  %v201 = vld [vmem:[%s1 + $0x398] sm:$0xff]
  %v202 = vld [vmem:[%s1 + $0x3a0] sm:$0xff]
  %v203 = vld [vmem:[%s1 + $0x3a8] sm:$0xff]
  %v204 = vld [vmem:[%s1 + $0x3b0] sm:$0xff]
  %v205 = vld [vmem:[%s1 + $0x3b8] sm:$0xff]
  %v206 = vld [vmem:[%s1 + $0x3c0] sm:$0xff]
  %v207 = vld [vmem:[%s1 + $0x3c8] sm:$0xff]
  %v208 = vld [vmem:[%s1 + $0x3d0] sm:$0xff]
  %v209 = vld [vmem:[%s1 + $0x3d8] sm:$0xff]
  %v210 = vld [vmem:[%s1 + $0x3e0] sm:$0xff]
  %v211 = vld [vmem:[%s1 + $0x3e8] sm:$0xff]
  %v212 = vld [vmem:[%s1 + $0x3f0] sm:$0xff]
  %v213 = vld [vmem:[%s1 + $0x3f8] sm:$0xff]
  %v214 = vld [vmem:[%s1 + $0x400] sm:$0xff]
  %v215 = vld [vmem:[%s1 + $0x408] sm:$0xff]
  %v216 = vld [vmem:[%s1 + $0x410] sm:$0xff]
  %v217 = vld [vmem:[%s1 + $0x418] sm:$0xff]
  %v218 = vld [vmem:[%s1 + $0x420] sm:$0xff]
  %v219 = vld [vmem:[%s1 + $0x428] sm:$0xff]
  %v220 = vld [vmem:[%s1 + $0x430] sm:$0xff]
  %v221 = vld [vmem:[%s1 + $0x438] sm:$0xff]
  %v222 = vld [vmem:[%s1 + $0x440] sm:$0xff]
  %v223 = vld [vmem:[%s1 + $0x448] sm:$0xff]
  %v224 = vld [vmem:[%s1 + $0x450] sm:$0xff]
  %v225 = vld [vmem:[%s1 + $0x458] sm:$0xff]
  %v226 = vld [vmem:[%s1 + $0x460] sm:$0xff]
  %v227 = vld [vmem:[%s1 + $0x468] sm:$0xff]
  %v228 = vld [vmem:[%s1 + $0x470] sm:$0xff]
  %v229 = vld [vmem:[%s1 + $0x478] sm:$0xff]
  %v230 = vld [vmem:[%s1 + $0x480] sm:$0xff]
  %v231 = vld [vmem:[%s1 + $0x488] sm:$0xff]
  %v232 = vld [vmem:[%s1 + $0x490] sm:$0xff]
  %v233 = vld [vmem:[%s1 + $0x498] sm:$0xff]
  %v234 = vld [vmem:[%s1 + $0x4a0] sm:$0xff]
  %v235 = vld [vmem:[%s1 + $0x4a8] sm:$0xff]
  %v236 = vld [vmem:[%s1 + $0x4b0] sm:$0xff]
  %v237 = vld [vmem:[%s1 + $0x4b8] sm:$0xff]
  %v238 = vld [vmem:[%s1 + $0x4c0] sm:$0xff]
  %v239 = vld [vmem:[%s1 + $0x4c8] sm:$0xff]
  %v240 = vld [vmem:[%s1 + $0x4d0] sm:$0xff]
  %v241 = vld [vmem:[%s1 + $0x4d8] sm:$0xff]
  %v242 = vld [vmem:[%s1 + $0x4e0] sm:$0xff]
  %v243 = vld [vmem:[%s1 + $0x4e8] sm:$0xff]
  %v244 = vld [vmem:[%s1 + $0x4f0] sm:$0xff]
  %v245 = vld [vmem:[%s1 + $0x4f8] sm:$0xff]
  %v246 = vld [vmem:[%s1 + $0x500] sm:$0xff]
  %v247 = vld [vmem:[%s1 + $0x508] sm:$0xff]
  %v248 = vld [vmem:[%s1 + $0x510] sm:$0xff]
  %v249 = vld [vmem:[%s1 + $0x518] sm:$0xff]
  %v250 = vld [vmem:[%s1 + $0x520] sm:$0xff]
  %v251 = vld [vmem:[%s1 + $0x528] sm:$0xff]
  %v252 = vld [vmem:[%s1 + $0x530] sm:$0xff]
  %v253 = vld [vmem:[%s1 + $0x538] sm:$0xff]
  %v254 = vld [vmem:[%s1 + $0x540] sm:$0xff]
  %v255 = vld [vmem:[%s1 + $0x548] sm:$0xff]
  %v256 = vld [vmem:[%s1 + $0x550] sm:$0xff]
  %v257 = vld [vmem:[%s1 + $0x558] sm:$0xff]
  %v258 = vld [vmem:[%s1 + $0x560] sm:$0xff]
  %v259 = vld [vmem:[%s1 + $0x568] sm:$0xff]
  %v260 = vld [vmem:[%s1 + $0x570] sm:$0xff]
  %v261 = vld [vmem:[%s1 + $0x578] sm:$0xff]
  %v262 = vld [vmem:[%s1 + $0x580] sm:$0xff]
  %v263 = vld [vmem:[%s1 + $0x588] sm:$0xff]
  %v264 = vld [vmem:[%s1 + $0x590] sm:$0xff]
  %v265 = vld [vmem:[%s1 + $0x598] sm:$0xff]
  %v266 = vld [vmem:[%s1 + $0x5a0] sm:$0xff]
  %v267 = vld [vmem:[%s1 + $0x5a8] sm:$0xff]
  %v268 = vld [vmem:[%s1 + $0x5b0] sm:$0xff]
  %v269 = vld [vmem:[%s1 + $0x5b8] sm:$0xff]
  %v270 = vld [vmem:[%s1 + $0x5c0] sm:$0xff]
  %v271 = vld [vmem:[%s1 + $0x5c8] sm:$0xff]
  %v272 = vld [vmem:[%s1 + $0x5d0] sm:$0xff]
  %v273 = vld [vmem:[%s1 + $0x5d8] sm:$0xff]
  %v274 = vld [vmem:[%s1 + $0x5e0] sm:$0xff]
  %v275 = vld [vmem:[%s1 + $0x5e8] sm:$0xff]
  %v276 = vld [vmem:[%s1 + $0x5f0] sm:$0xff]
  %v277 = vld [vmem:[%s1 + $0x5f8] sm:$0xff]
  %v278 = vld [vmem:[%s1 + $0x600] sm:$0xff]
  %v279 = vld [vmem:[%s1 + $0x608] sm:$0xff]
  %v280 = vld [vmem:[%s1 + $0x610] sm:$0xff]
  %v281 = vld [vmem:[%s1 + $0x618] sm:$0xff]
  %v282 = vld [vmem:[%s1 + $0x620] sm:$0xff]
  %v283 = vld [vmem:[%s1 + $0x628] sm:$0xff]
  %v284 = vld [vmem:[%s1 + $0x630] sm:$0xff]
  %v285 = vld [vmem:[%s1 + $0x638] sm:$0xff]
  %v286 = vld [vmem:[%s1 + $0x640] sm:$0xff]
  %v287 = vld [vmem:[%s1 + $0x648] sm:$0xff]
  %v288 = vld [vmem:[%s1 + $0x650] sm:$0xff]
  %v289 = vld [vmem:[%s1 + $0x658] sm:$0xff]
  %v290 = vld [vmem:[%s1 + $0x660] sm:$0xff]
  %v291 = vld [vmem:[%s1 + $0x668] sm:$0xff]
  %v292 = vld [vmem:[%s1 + $0x670] sm:$0xff]
  %v293 = vld [vmem:[%s1 + $0x678] sm:$0xff]
  %v294 = vld [vmem:[%s1 + $0x680] sm:$0xff]
  %v295 = vld [vmem:[%s1 + $0x688] sm:$0xff]
  %v296 = vld [vmem:[%s1 + $0x690] sm:$0xff]
  %v297 = vld [vmem:[%s1 + $0x698] sm:$0xff]
  %v298 = vld [vmem:[%s1 + $0x6a0] sm:$0xff]
  %v299 = vld [vmem:[%s1 + $0x6a8] sm:$0xff]
  %v300 = vld [vmem:[%s1 + $0x6b0] sm:$0xff]
  %v301 = vld [vmem:[%s1 + $0x6b8] sm:$0xff]
  %v302 = vld [vmem:[%s1 + $0x6c0] sm:$0xff]
  %v303 = vld [vmem:[%s1 + $0x6c8] sm:$0xff]
  %v304 = vld [vmem:[%s1 + $0x6d0] sm:$0xff]
  %v305 = vld [vmem:[%s1 + $0x6d8] sm:$0xff]
  %v306 = vld [vmem:[%s1 + $0x6e0] sm:$0xff]
  %v307 = vld [vmem:[%s1 + $0x6e8] sm:$0xff]
  %v308 = vld [vmem:[%s1 + $0x6f0] sm:$0xff]
  %v309 = vld [vmem:[%s1 + $0x6f8] sm:$0xff]
  %v310 = vld [vmem:[%s1 + $0x700] sm:$0xff]
  %v311 = vld [vmem:[%s1 + $0x708] sm:$0xff]
  %v312 = vld [vmem:[%s1 + $0x710] sm:$0xff]
  %v313 = vld [vmem:[%s1 + $0x718] sm:$0xff]
  %v314 = vld [vmem:[%s1 + $0x720] sm:$0xff]
  %v315 = vld [vmem:[%s1 + $0x728] sm:$0xff]
  %v316 = vld [vmem:[%s1 + $0x730] sm:$0xff]
  %v317 = vld [vmem:[%s1 + $0x738] sm:$0xff]
  %v318 = vld [vmem:[%s1 + $0x740] sm:$0xff]
  %v319 = vld [vmem:[%s1 + $0x748] sm:$0xff]
  %v320 = vld [vmem:[%s1 + $0x750] sm:$0xff]
  %v321 = vld [vmem:[%s1 + $0x758] sm:$0xff]
  %v322 = vld [vmem:[%s1 + $0x760] sm:$0xff]
  %v323 = vld [vmem:[%s1 + $0x768] sm:$0xff]
  %v324 = vld [vmem:[%s1 + $0x770] sm:$0xff]
  %v325 = vld [vmem:[%s1 + $0x778] sm:$0xff]
  %v326 = vld [vmem:[%s1 + $0x780] sm:$0xff]
  %v327 = vld [vmem:[%s1 + $0x788] sm:$0xff]
  %v328 = vld [vmem:[%s1 + $0x790] sm:$0xff]
  %v329 = vld [vmem:[%s1 + $0x798] sm:$0xff]
  %v330 = vld [vmem:[%s1 + $0x7a0] sm:$0xff]
  %v331 = vld [vmem:[%s1 + $0x7a8] sm:$0xff]
  %v332 = vld [vmem:[%s1 + $0x7b0] sm:$0xff]
  %v333 = vld [vmem:[%s1 + $0x7b8] sm:$0xff]
  %v334 = vld [vmem:[%s1 + $0x7c0] sm:$0xff]
  %v335 = vld [vmem:[%s1 + $0x7c8] sm:$0xff]
  %v336 = vld [vmem:[%s1 + $0x7d0] sm:$0xff]
  %v337 = vld [vmem:[%s1 + $0x7d8] sm:$0xff]
  %v338 = vld [vmem:[%s1 + $0x7e0] sm:$0xff]
  %v339 = vld [vmem:[%s1 + $0x7e8] sm:$0xff]
  %v340 = vld [vmem:[%s1 + $0x7f0] sm:$0xff]
  %v341 = vld [vmem:[%s1 + $0x7f8] sm:$0xff]
  %v342 = vld [vmem:[%s1 + $0x800] sm:$0xff]
  %v343 = vld [vmem:[%s1 + $0x808] sm:$0xff]
  %v344 = vld [vmem:[%s1 + $0x810] sm:$0xff]
  %v345 = vld [vmem:[%s1 + $0x818] sm:$0xff]
  %v346 = vld [vmem:[%s1 + $0x820] sm:$0xff]
  %v347 = vld [vmem:[%s1 + $0x828] sm:$0xff]
  %v348 = vld [vmem:[%s1 + $0x830] sm:$0xff]
  %v349 = vld [vmem:[%s1 + $0x838] sm:$0xff]
  %v350 = vld [vmem:[%s1 + $0x840] sm:$0xff]
  %v351 = vld [vmem:[%s1 + $0x848] sm:$0xff]
  %v352 = vld [vmem:[%s1 + $0x850] sm:$0xff]
  %v353 = vld [vmem:[%s1 + $0x858] sm:$0xff]
  %v354 = vld [vmem:[%s1 + $0x860] sm:$0xff]
  %v355 = vld [vmem:[%s1 + $0x868] sm:$0xff]
  %v356 = vld [vmem:[%s1 + $0x870] sm:$0xff]
  %v357 = vld [vmem:[%s1 + $0x878] sm:$0xff]
  %v358 = vld [vmem:[%s1 + $0x880] sm:$0xff]
  %v359 = vld [vmem:[%s1 + $0x888] sm:$0xff]
  %v360 = vld [vmem:[%s1 + $0x890] sm:$0xff]
  %v361 = vld [vmem:[%s1 + $0x898] sm:$0xff]
  %v362 = vld [vmem:[%s1 + $0x8a0] sm:$0xff]
  %v363 = vld [vmem:[%s1 + $0x8a8] sm:$0xff]
  %v364 = vld [vmem:[%s1 + $0x8b0] sm:$0xff]
  %v365 = vld [vmem:[%s1 + $0x8b8] sm:$0xff]
  %v366 = vld [vmem:[%s1 + $0x8c0] sm:$0xff]
  %v367 = vld [vmem:[%s1 + $0x8c8] sm:$0xff]
  %v368 = vld [vmem:[%s1 + $0x8d0] sm:$0xff]
  %v369 = vld [vmem:[%s1 + $0x8d8] sm:$0xff]
  %v370 = vld [vmem:[%s1 + $0x8e0] sm:$0xff]
  %v371 = vld [vmem:[%s1 + $0x8e8] sm:$0xff]
  %v372 = vld [vmem:[%s1 + $0x8f0] sm:$0xff]
  %v373 = vld [vmem:[%s1 + $0x8f8] sm:$0xff]
  %v374 = vld [vmem:[%s1 + $0x900] sm:$0xff]
  %v375 = vld [vmem:[%s1 + $0x908] sm:$0xff]
  %v376 = vld [vmem:[%s1 + $0x910] sm:$0xff]
  %v377 = vld [vmem:[%s1 + $0x918] sm:$0xff]
  %v378 = vld [vmem:[%s1 + $0x920] sm:$0xff]
  %v379 = vld [vmem:[%s1 + $0x928] sm:$0xff]
  %v380 = vld [vmem:[%s1 + $0x930] sm:$0xff]
  %v381 = vld [vmem:[%s1 + $0x938] sm:$0xff]
  %v382 = vld [vmem:[%s1 + $0x940] sm:$0xff]
  %v383 = vld [vmem:[%s1 + $0x948] sm:$0xff]
  %v384 = vld [vmem:[%s1 + $0x950] sm:$0xff]
  %v385 = vld [vmem:[%s1 + $0x958] sm:$0xff]
  %v386 = vld [vmem:[%s1 + $0x960] sm:$0xff]
  %v387 = vld [vmem:[%s1 + $0x968] sm:$0xff]
  %v388 = vld [vmem:[%s1 + $0x970] sm:$0xff]
  %v389 = vld [vmem:[%s1 + $0x978] sm:$0xff]
  %v390 = vld [vmem:[%s1 + $0x980] sm:$0xff]
  %v391 = vld [vmem:[%s1 + $0x988] sm:$0xff]
  %v392 = vld [vmem:[%s1 + $0x990] sm:$0xff]
  %v393 = vld [vmem:[%s1 + $0x998] sm:$0xff]
  %v394 = vld [vmem:[%s1 + $0x9a0] sm:$0xff]
  %v395 = vld [vmem:[%s1 + $0x9a8] sm:$0xff]
  %v396 = vld [vmem:[%s1 + $0x9b0] sm:$0xff]
  %v397 = vld [vmem:[%s1 + $0x9b8] sm:$0xff]
  %v398 = vld [vmem:[%s1 + $0x9c0] sm:$0xff]
  %v399 = vld [vmem:[%s1 + $0x9c8] sm:$0xff]
  %v400 = vld [vmem:[%s1 + $0x9d0] sm:$0xff]
  %v401 = vld [vmem:[%s1 + $0x9d8] sm:$0xff]
  %v402 = vld [vmem:[%s1 + $0x9e0] sm:$0xff]
  %v403 = vld [vmem:[%s1 + $0x9e8] sm:$0xff]
  %v404 = vld [vmem:[%s1 + $0x9f0] sm:$0xff]
  %v405 = vld [vmem:[%s1 + $0x9f8] sm:$0xff]
  %v406 = vld [vmem:[%s1 + $0xa00] sm:$0xff]
  %v407 = vld [vmem:[%s1 + $0xa08] sm:$0xff]
  %v408 = vld [vmem:[%s1 + $0xa10] sm:$0xff]
  %v409 = vld [vmem:[%s1 + $0xa18] sm:$0xff]
  %v410 = vld [vmem:[%s1 + $0xa20] sm:$0xff]
  %v411 = vld [vmem:[%s1 + $0xa28] sm:$0xff]
  %v412 = vld [vmem:[%s1 + $0xa30] sm:$0xff]
  %v413 = vld [vmem:[%s1 + $0xa38] sm:$0xff]
  %v414 = vld [vmem:[%s1 + $0xa40] sm:$0xff]
  %v415 = vld [vmem:[%s1 + $0xa48] sm:$0xff]
  %v416 = vld [vmem:[%s1 + $0xa50] sm:$0xff]
  %v417 = vld [vmem:[%s1 + $0xa58] sm:$0xff]
  %v418 = vld [vmem:[%s1 + $0xa60] sm:$0xff]
  %v419 = vld [vmem:[%s1 + $0xa68] sm:$0xff]
  %v420 = vld [vmem:[%s1 + $0xa70] sm:$0xff]
  %v421 = vld [vmem:[%s1 + $0xa78] sm:$0xff]
  %v422 = vld [vmem:[%s1 + $0xa80] sm:$0xff]
  %v423 = vld [vmem:[%s1 + $0xa88] sm:$0xff]
  %v424 = vld [vmem:[%s1 + $0xa90] sm:$0xff]
  %v425 = vld [vmem:[%s1 + $0xa98] sm:$0xff]
  %v426 = vld [vmem:[%s1 + $0xaa0] sm:$0xff]
  %v427 = vld [vmem:[%s1 + $0xaa8] sm:$0xff]
  %v428 = vld [vmem:[%s1 + $0xab0] sm:$0xff]
  %v429 = vld [vmem:[%s1 + $0xab8] sm:$0xff]
  %v430 = vld [vmem:[%s1 + $0xac0] sm:$0xff]
  %v431 = vld [vmem:[%s1 + $0xac8] sm:$0xff]
  %v432 = vld [vmem:[%s1 + $0xad0] sm:$0xff]
  %v433 = vld [vmem:[%s1 + $0xad8] sm:$0xff]
  %v434 = vld [vmem:[%s1 + $0xae0] sm:$0xff]
  %v435 = vld [vmem:[%s1 + $0xae8] sm:$0xff]
  %v436 = vld [vmem:[%s1 + $0xaf0] sm:$0xff]
  %v437 = vld [vmem:[%s1 + $0xaf8] sm:$0xff]
  %v438 = vld [vmem:[%s1 + $0xb00] sm:$0xff]
  %v439 = vld [vmem:[%s1 + $0xb08] sm:$0xff]
  %v440 = vld [vmem:[%s1 + $0xb10] sm:$0xff]
  %v441 = vld [vmem:[%s1 + $0xb18] sm:$0xff]
  %v442 = vld [vmem:[%s1 + $0xb20] sm:$0xff]
  %v443 = vld [vmem:[%s1 + $0xb28] sm:$0xff]
  %v444 = vld [vmem:[%s1 + $0xb30] sm:$0xff]
  %v445 = vld [vmem:[%s1 + $0xb38] sm:$0xff]
  %v446 = vld [vmem:[%s1 + $0xb40] sm:$0xff]
  %v447 = vld [vmem:[%s1 + $0xb48] sm:$0xff]
  %v448 = vld [vmem:[%s1 + $0xb50] sm:$0xff]
  %v449 = vld [vmem:[%s1 + $0xb58] sm:$0xff]
  %v450 = vld [vmem:[%s1 + $0xb60] sm:$0xff]
  %v451 = vld [vmem:[%s1 + $0xb68] sm:$0xff]
  %v452 = vld [vmem:[%s1 + $0xb70] sm:$0xff]
  %v453 = vld [vmem:[%s1 + $0xb78] sm:$0xff]
  %v454 = vld [vmem:[%s1 + $0xb80] sm:$0xff]
  %v455 = vld [vmem:[%s1 + $0xb88] sm:$0xff]
  %v456 = vld [vmem:[%s1 + $0xb90] sm:$0xff]
  %v457 = vld [vmem:[%s1 + $0xb98] sm:$0xff]
  %v458 = vld [vmem:[%s1 + $0xba0] sm:$0xff]
  %v459 = vld [vmem:[%s1 + $0xba8] sm:$0xff]
  %v460 = vld [vmem:[%s1 + $0xbb0] sm:$0xff]
  %v461 = vld [vmem:[%s1 + $0xbb8] sm:$0xff]
  %v462 = vld [vmem:[%s1 + $0xbc0] sm:$0xff]
  %v463 = vld [vmem:[%s1 + $0xbc8] sm:$0xff]
  %v464 = vld [vmem:[%s1 + $0xbd0] sm:$0xff]
  %v465 = vld [vmem:[%s1 + $0xbd8] sm:$0xff]
  %v466 = vld [vmem:[%s1 + $0xbe0] sm:$0xff]
  %v467 = vld [vmem:[%s1 + $0xbe8] sm:$0xff]
  %v468 = vld [vmem:[%s1 + $0xbf0] sm:$0xff]
  %v469 = vld [vmem:[%s1 + $0xbf8] sm:$0xff]
  %v470 = vld [vmem:[%s1 + $0xc00] sm:$0xff]
  %v471 = vld [vmem:[%s1 + $0xc08] sm:$0xff]
  %v472 = vld [vmem:[%s1 + $0xc10] sm:$0xff]
  %v473 = vld [vmem:[%s1 + $0xc18] sm:$0xff]
  %v474 = vld [vmem:[%s1 + $0xc20] sm:$0xff]
  %v475 = vld [vmem:[%s1 + $0xc28] sm:$0xff]
  %v476 = vld [vmem:[%s1 + $0xc30] sm:$0xff]
  %v477 = vld [vmem:[%s1 + $0xc38] sm:$0xff]
  %v478 = vld [vmem:[%s1 + $0xc40] sm:$0xff]
  %v479 = vld [vmem:[%s1 + $0xc48] sm:$0xff]
  %v480 = vld [vmem:[%s1 + $0xc50] sm:$0xff]
  %v481 = vld [vmem:[%s1 + $0xc58] sm:$0xff]
  %v482 = vld [vmem:[%s1 + $0xc60] sm:$0xff]
  %v483 = vld [vmem:[%s1 + $0xc68] sm:$0xff]
  %v484 = vld [vmem:[%s1 + $0xc70] sm:$0xff]
  %v485 = vld [vmem:[%s1 + $0xc78] sm:$0xff]
  %v486 = vld [vmem:[%s1 + $0xc80] sm:$0xff]
  %v487 = vld [vmem:[%s1 + $0xc88] sm:$0xff]
  %v488 = vld [vmem:[%s1 + $0xc90] sm:$0xff]
  %v489 = vld [vmem:[%s1 + $0xc98] sm:$0xff]
  %v490 = vld [vmem:[%s1 + $0xca0] sm:$0xff]
  %v491 = vld [vmem:[%s1 + $0xca8] sm:$0xff]
  %v492 = vld [vmem:[%s1 + $0xcb0] sm:$0xff]
  %v493 = vld [vmem:[%s1 + $0xcb8] sm:$0xff]
  %v494 = vld [vmem:[%s1 + $0xcc0] sm:$0xff]
  %v495 = vld [vmem:[%s1 + $0xcc8] sm:$0xff]
  %v496 = vld [vmem:[%s1 + $0xcd0] sm:$0xff]
  %v497 = vld [vmem:[%s1 + $0xcd8] sm:$0xff]
  %v498 = vld [vmem:[%s1 + $0xce0] sm:$0xff]
  %v499 = vld [vmem:[%s1 + $0xce8] sm:$0xff]
  %v500 = vld [vmem:[%s1 + $0xcf0] sm:$0xff]
  %v501 = vld [vmem:[%s1 + $0xcf8] sm:$0xff]
  %v502 = vld [vmem:[%s1 + $0xd00] sm:$0xff]
  %v503 = vld [vmem:[%s1 + $0xd08] sm:$0xff]
  %v504 = vld [vmem:[%s1 + $0xd10] sm:$0xff]
  %v505 = vld [vmem:[%s1 + $0xd18] sm:$0xff]
  %v506 = vld [vmem:[%s1 + $0xd20] sm:$0xff]
  %v507 = vld [vmem:[%s1 + $0xd28] sm:$0xff]
  %v508 = vld [vmem:[%s1 + $0xd30] sm:$0xff]
  %v509 = vld [vmem:[%s1 + $0xd38] sm:$0xff]
  %v510 = vld [vmem:[%s1 + $0xd40] sm:$0xff]
  %v511 = vld [vmem:[%s1 + $0xd48] sm:$0xff]
  %v512 = vld [vmem:[%s1 + $0xd50] sm:$0xff]
  %v513 = vld [vmem:[%s1 + $0xd58] sm:$0xff]
  %v514 = vld [vmem:[%s1 + $0xd60] sm:$0xff]
  %v515 = vld [vmem:[%s1 + $0xd68] sm:$0xff]
  %v516 = vld [vmem:[%s1 + $0xd70] sm:$0xff]
  %v517 = vld [vmem:[%s1 + $0xd78] sm:$0xff]
  %v518 = vld [vmem:[%s1 + $0xd80] sm:$0xff]
  %v519 = vld [vmem:[%s1 + $0xd88] sm:$0xff]
  %v520 = vld [vmem:[%s1 + $0xd90] sm:$0xff]
  %v521 = vld [vmem:[%s1 + $0xd98] sm:$0xff]
  %v522 = vld [vmem:[%s1 + $0xda0] sm:$0xff]
  %v523 = vld [vmem:[%s1 + $0xda8] sm:$0xff]
  %v524 = vld [vmem:[%s1 + $0xdb0] sm:$0xff]
  %v525 = vld [vmem:[%s1 + $0xdb8] sm:$0xff]
  %v526 = vld [vmem:[%s1 + $0xdc0] sm:$0xff]
  %v527 = vld [vmem:[%s1 + $0xdc8] sm:$0xff]
  %v528 = vld [vmem:[%s1 + $0xdd0] sm:$0xff]
  %v529 = vld [vmem:[%s1 + $0xdd8] sm:$0xff]
  %v530 = vld [vmem:[%s1 + $0xde0] sm:$0xff]
  %v531 = vld [vmem:[%s1 + $0xde8] sm:$0xff]
  %v532 = vld [vmem:[%s1 + $0xdf0] sm:$0xff]
  %v533 = vld [vmem:[%s1 + $0xdf8] sm:$0xff]
  %v534 = vld [vmem:[%s1 + $0xe00] sm:$0xff]
  %v535 = vld [vmem:[%s1 + $0xe08] sm:$0xff]
  %v536 = vld [vmem:[%s1 + $0xe10] sm:$0x1]
  %v537 = vld [vmem:[%s2] sm:$0x1]
  %v539 = vperm.slane %v537, 0
  %vm541 = vcmask 138240
  %v543 = vsel %vm541, %v56, 0
  %v546 = vsel %vm541, %v85, 0
  %vm548 = vcmask 1040384
  %v550 = vsel %vm548, %v536, 0
  %552 = vmatpush.msra.mxu0 %v101
  %553 = vmatpush.msra.mxu0 %v100
  %554 = vmatpush.msra.mxu0 %v99
  %555 = vmatpush.msra.mxu0 %v98
  %556 = vmatpush.msra.mxu0 %v97
  %557 = vmatpush.msra.mxu0 %v96
  %558 = vmatpush.msra.mxu0 %v95
  %559 = vmatpush.msra.mxu0 %v94
  %560 = vmatpush.msra.mxu0 %v93
  %561 = vmatpush.msra.mxu0 %v92
  %562 = vmatpush.msra.mxu0 %v91
  %563 = vmatpush.msra.mxu0 %v90
  %564 = vmatpush.msra.mxu0 %v89
  %565 = vmatpush.msra.mxu0 %v88
  %566 = vmatpush.msra.mxu0 %v87
  %567 = vmatpush.msra.mxu0 %v86
  %568 = vmatmul.f32.gmra.mxu0 %v28
  %v569 = vpop.f32.mrf.mxu0
  %v570 = vadd.f32 %v539, %v569
  %571 = vmatmul.f32.gmra.mxu0 %v57
  %v572 = vpop.f32.mrf.mxu0
  %v573 = vadd.f32 %v539, %v572
  %574 = vdwg.mxu0
  %575 = vmatpush.msra.mxu0 %v117
  %576 = vmatpush.msra.mxu0 %v116
  %577 = vmatpush.msra.mxu0 %v115
  %578 = vmatpush.msra.mxu0 %v114
  %579 = vmatpush.msra.mxu0 %v113
  %580 = vmatpush.msra.mxu0 %v112
  %581 = vmatpush.msra.mxu0 %v111
  %582 = vmatpush.msra.mxu0 %v110
  %583 = vmatpush.msra.mxu0 %v109
  %584 = vmatpush.msra.mxu0 %v108
  %585 = vmatpush.msra.mxu0 %v107
  %586 = vmatpush.msra.mxu0 %v106
  %587 = vmatpush.msra.mxu0 %v105
  %588 = vmatpush.msra.mxu0 %v104
  %589 = vmatpush.msra.mxu0 %v103
  %590 = vmatpush.msra.mxu0 %v102
  %591 = vmatmul.f32.gmra.mxu0 %v29
  %v592 = vpop.f32.mrf.mxu0
  %v593 = vadd.f32 %v570, %v592
  %594 = vmatmul.f32.gmra.mxu0 %v58
  %v595 = vpop.f32.mrf.mxu0
  %v596 = vadd.f32 %v573, %v595
  %597 = vdwg.mxu0
  %598 = vmatpush.msra.mxu0 %v133
  %599 = vmatpush.msra.mxu0 %v132
  %600 = vmatpush.msra.mxu0 %v131
  %601 = vmatpush.msra.mxu0 %v130
  %602 = vmatpush.msra.mxu0 %v129
  %603 = vmatpush.msra.mxu0 %v128
  %604 = vmatpush.msra.mxu0 %v127
  %605 = vmatpush.msra.mxu0 %v126
  %606 = vmatpush.msra.mxu0 %v125
  %607 = vmatpush.msra.mxu0 %v124
  %608 = vmatpush.msra.mxu0 %v123
  %609 = vmatpush.msra.mxu0 %v122
  %610 = vmatpush.msra.mxu0 %v121
  %611 = vmatpush.msra.mxu0 %v120
  %612 = vmatpush.msra.mxu0 %v119
  %613 = vmatpush.msra.mxu0 %v118
  %614 = vmatmul.f32.gmra.mxu0 %v30
  %v615 = vpop.f32.mrf.mxu0
  %v616 = vadd.f32 %v593, %v615
  %617 = vmatmul.f32.gmra.mxu0 %v59
  %v618 = vpop.f32.mrf.mxu0
  %v619 = vadd.f32 %v596, %v618
  %620 = vdwg.mxu0
  %621 = vmatpush.msra.mxu0 %v149
  %622 = vmatpush.msra.mxu0 %v148
  %623 = vmatpush.msra.mxu0 %v147
  %624 = vmatpush.msra.mxu0 %v146
  %625 = vmatpush.msra.mxu0 %v145
  %626 = vmatpush.msra.mxu0 %v144
  %627 = vmatpush.msra.mxu0 %v143
  %628 = vmatpush.msra.mxu0 %v142
  %629 = vmatpush.msra.mxu0 %v141
  %630 = vmatpush.msra.mxu0 %v140
  %631 = vmatpush.msra.mxu0 %v139
  %632 = vmatpush.msra.mxu0 %v138
  %633 = vmatpush.msra.mxu0 %v137
  %634 = vmatpush.msra.mxu0 %v136
  %635 = vmatpush.msra.mxu0 %v135
  %636 = vmatpush.msra.mxu0 %v134
  %637 = vmatmul.f32.gmra.mxu0 %v31
  %v638 = vpop.f32.mrf.mxu0
  %v639 = vadd.f32 %v616, %v638
  %640 = vmatmul.f32.gmra.mxu0 %v60
  %v641 = vpop.f32.mrf.mxu0
  %v642 = vadd.f32 %v619, %v641
  %643 = vdwg.mxu0
  %644 = vmatpush.msra.mxu0 %v165
  %645 = vmatpush.msra.mxu0 %v164
  %646 = vmatpush.msra.mxu0 %v163
  %647 = vmatpush.msra.mxu0 %v162
  %648 = vmatpush.msra.mxu0 %v161
  %649 = vmatpush.msra.mxu0 %v160
  %650 = vmatpush.msra.mxu0 %v159
  %651 = vmatpush.msra.mxu0 %v158
  %652 = vmatpush.msra.mxu0 %v157
  %653 = vmatpush.msra.mxu0 %v156
  %654 = vmatpush.msra.mxu0 %v155
  %655 = vmatpush.msra.mxu0 %v154
  %656 = vmatpush.msra.mxu0 %v153
  %657 = vmatpush.msra.mxu0 %v152
  %658 = vmatpush.msra.mxu0 %v151
  %659 = vmatpush.msra.mxu0 %v150
  %660 = vmatmul.f32.gmra.mxu0 %v32
  %v661 = vpop.f32.mrf.mxu0
  %v662 = vadd.f32 %v639, %v661
  %663 = vmatmul.f32.gmra.mxu0 %v61
  %v664 = vpop.f32.mrf.mxu0
  %v665 = vadd.f32 %v642, %v664
  %666 = vdwg.mxu0
  %667 = vmatpush.msra.mxu0 %v181
  %668 = vmatpush.msra.mxu0 %v180
  %669 = vmatpush.msra.mxu0 %v179
  %670 = vmatpush.msra.mxu0 %v178
  %671 = vmatpush.msra.mxu0 %v177
  %672 = vmatpush.msra.mxu0 %v176
  %673 = vmatpush.msra.mxu0 %v175
  %674 = vmatpush.msra.mxu0 %v174
  %675 = vmatpush.msra.mxu0 %v173
  %676 = vmatpush.msra.mxu0 %v172
  %677 = vmatpush.msra.mxu0 %v171
  %678 = vmatpush.msra.mxu0 %v170
  %679 = vmatpush.msra.mxu0 %v169
  %680 = vmatpush.msra.mxu0 %v168
  %681 = vmatpush.msra.mxu0 %v167
  %682 = vmatpush.msra.mxu0 %v166
  %683 = vmatmul.f32.gmra.mxu0 %v33
  %v684 = vpop.f32.mrf.mxu0
  %v685 = vadd.f32 %v662, %v684
  %686 = vmatmul.f32.gmra.mxu0 %v62
  %v687 = vpop.f32.mrf.mxu0
  %v688 = vadd.f32 %v665, %v687
  %689 = vdwg.mxu0
  %690 = vmatpush.msra.mxu0 %v197
  %691 = vmatpush.msra.mxu0 %v196
  %692 = vmatpush.msra.mxu0 %v195
  %693 = vmatpush.msra.mxu0 %v194
  %694 = vmatpush.msra.mxu0 %v193
  %695 = vmatpush.msra.mxu0 %v192
  %696 = vmatpush.msra.mxu0 %v191
  %697 = vmatpush.msra.mxu0 %v190
  %698 = vmatpush.msra.mxu0 %v189
  %699 = vmatpush.msra.mxu0 %v188
  %700 = vmatpush.msra.mxu0 %v187
  %701 = vmatpush.msra.mxu0 %v186
  %702 = vmatpush.msra.mxu0 %v185
  %703 = vmatpush.msra.mxu0 %v184
  %704 = vmatpush.msra.mxu0 %v183
  %705 = vmatpush.msra.mxu0 %v182
  %706 = vmatmul.f32.gmra.mxu0 %v34
  %v707 = vpop.f32.mrf.mxu0
  %v708 = vadd.f32 %v685, %v707
  %709 = vmatmul.f32.gmra.mxu0 %v63
  %v710 = vpop.f32.mrf.mxu0
  %v711 = vadd.f32 %v688, %v710
  %712 = vdwg.mxu0
  %713 = vmatpush.msra.mxu0 %v213
  %714 = vmatpush.msra.mxu0 %v212
  %715 = vmatpush.msra.mxu0 %v211
  %716 = vmatpush.msra.mxu0 %v210
  %717 = vmatpush.msra.mxu0 %v209
  %718 = vmatpush.msra.mxu0 %v208
  %719 = vmatpush.msra.mxu0 %v207
  %720 = vmatpush.msra.mxu0 %v206
  %721 = vmatpush.msra.mxu0 %v205
  %722 = vmatpush.msra.mxu0 %v204
  %723 = vmatpush.msra.mxu0 %v203
  %724 = vmatpush.msra.mxu0 %v202
  %725 = vmatpush.msra.mxu0 %v201
  %726 = vmatpush.msra.mxu0 %v200
  %727 = vmatpush.msra.mxu0 %v199
  %728 = vmatpush.msra.mxu0 %v198
  %729 = vmatmul.f32.gmra.mxu0 %v35
  %v730 = vpop.f32.mrf.mxu0
  %v731 = vadd.f32 %v708, %v730
  %732 = vmatmul.f32.gmra.mxu0 %v64
  %v733 = vpop.f32.mrf.mxu0
  %v734 = vadd.f32 %v711, %v733
  %735 = vdwg.mxu0
  %736 = vmatpush.msra.mxu0 %v229
  %737 = vmatpush.msra.mxu0 %v228
  %738 = vmatpush.msra.mxu0 %v227
  %739 = vmatpush.msra.mxu0 %v226
  %740 = vmatpush.msra.mxu0 %v225
  %741 = vmatpush.msra.mxu0 %v224
  %742 = vmatpush.msra.mxu0 %v223
  %743 = vmatpush.msra.mxu0 %v222
  %744 = vmatpush.msra.mxu0 %v221
  %745 = vmatpush.msra.mxu0 %v220
  %746 = vmatpush.msra.mxu0 %v219
  %747 = vmatpush.msra.mxu0 %v218
  %748 = vmatpush.msra.mxu0 %v217
  %749 = vmatpush.msra.mxu0 %v216
  %750 = vmatpush.msra.mxu0 %v215
  %751 = vmatpush.msra.mxu0 %v214
  %752 = vmatmul.f32.gmra.mxu0 %v36
  %v753 = vpop.f32.mrf.mxu0
  %v754 = vadd.f32 %v731, %v753
  %755 = vmatmul.f32.gmra.mxu0 %v65
  %v756 = vpop.f32.mrf.mxu0
  %v757 = vadd.f32 %v734, %v756
  %758 = vdwg.mxu0
  %759 = vmatpush.msra.mxu0 %v245
  %760 = vmatpush.msra.mxu0 %v244
  %761 = vmatpush.msra.mxu0 %v243
  %762 = vmatpush.msra.mxu0 %v242
  %763 = vmatpush.msra.mxu0 %v241
  %764 = vmatpush.msra.mxu0 %v240
  %765 = vmatpush.msra.mxu0 %v239
  %766 = vmatpush.msra.mxu0 %v238
  %767 = vmatpush.msra.mxu0 %v237
  %768 = vmatpush.msra.mxu0 %v236
  %769 = vmatpush.msra.mxu0 %v235
  %770 = vmatpush.msra.mxu0 %v234
  %771 = vmatpush.msra.mxu0 %v233
  %772 = vmatpush.msra.mxu0 %v232
  %773 = vmatpush.msra.mxu0 %v231
  %774 = vmatpush.msra.mxu0 %v230
  %775 = vmatmul.f32.gmra.mxu0 %v37
  %v776 = vpop.f32.mrf.mxu0
  %v777 = vadd.f32 %v754, %v776
  %778 = vmatmul.f32.gmra.mxu0 %v66
  %v779 = vpop.f32.mrf.mxu0
  %v780 = vadd.f32 %v757, %v779
  %781 = vdwg.mxu0
  %782 = vmatpush.msra.mxu0 %v261
  %783 = vmatpush.msra.mxu0 %v260
  %784 = vmatpush.msra.mxu0 %v259
  %785 = vmatpush.msra.mxu0 %v258
  %786 = vmatpush.msra.mxu0 %v257
  %787 = vmatpush.msra.mxu0 %v256
  %788 = vmatpush.msra.mxu0 %v255
  %789 = vmatpush.msra.mxu0 %v254
  %790 = vmatpush.msra.mxu0 %v253
  %791 = vmatpush.msra.mxu0 %v252
  %792 = vmatpush.msra.mxu0 %v251
  %793 = vmatpush.msra.mxu0 %v250
  %794 = vmatpush.msra.mxu0 %v249
  %795 = vmatpush.msra.mxu0 %v248
  %796 = vmatpush.msra.mxu0 %v247
  %797 = vmatpush.msra.mxu0 %v246
  %798 = vmatmul.f32.gmra.mxu0 %v38
  %v799 = vpop.f32.mrf.mxu0
  %v800 = vadd.f32 %v777, %v799
  %801 = vmatmul.f32.gmra.mxu0 %v67
  %v802 = vpop.f32.mrf.mxu0
  %v803 = vadd.f32 %v780, %v802
  %804 = vdwg.mxu0
  %805 = vmatpush.msra.mxu0 %v277
  %806 = vmatpush.msra.mxu0 %v276
  %807 = vmatpush.msra.mxu0 %v275
  %808 = vmatpush.msra.mxu0 %v274
  %809 = vmatpush.msra.mxu0 %v273
  %810 = vmatpush.msra.mxu0 %v272
  %811 = vmatpush.msra.mxu0 %v271
  %812 = vmatpush.msra.mxu0 %v270
  %813 = vmatpush.msra.mxu0 %v269
  %814 = vmatpush.msra.mxu0 %v268
  %815 = vmatpush.msra.mxu0 %v267
  %816 = vmatpush.msra.mxu0 %v266
  %817 = vmatpush.msra.mxu0 %v265
  %818 = vmatpush.msra.mxu0 %v264
  %819 = vmatpush.msra.mxu0 %v263
  %820 = vmatpush.msra.mxu0 %v262
  %821 = vmatmul.f32.gmra.mxu0 %v39
  %v822 = vpop.f32.mrf.mxu0
  %v823 = vadd.f32 %v800, %v822
  %824 = vmatmul.f32.gmra.mxu0 %v68
  %v825 = vpop.f32.mrf.mxu0
  %v826 = vadd.f32 %v803, %v825
  %827 = vdwg.mxu0
  %828 = vmatpush.msra.mxu0 %v293
  %829 = vmatpush.msra.mxu0 %v292
  %830 = vmatpush.msra.mxu0 %v291
  %831 = vmatpush.msra.mxu0 %v290
  %832 = vmatpush.msra.mxu0 %v289
  %833 = vmatpush.msra.mxu0 %v288
  %834 = vmatpush.msra.mxu0 %v287
  %835 = vmatpush.msra.mxu0 %v286
  %836 = vmatpush.msra.mxu0 %v285
  %837 = vmatpush.msra.mxu0 %v284
  %838 = vmatpush.msra.mxu0 %v283
  %839 = vmatpush.msra.mxu0 %v282
  %840 = vmatpush.msra.mxu0 %v281
  %841 = vmatpush.msra.mxu0 %v280
  %842 = vmatpush.msra.mxu0 %v279
  %843 = vmatpush.msra.mxu0 %v278
  %844 = vmatmul.f32.gmra.mxu0 %v40
  %v845 = vpop.f32.mrf.mxu0
  %v846 = vadd.f32 %v823, %v845
  %847 = vmatmul.f32.gmra.mxu0 %v69
  %v848 = vpop.f32.mrf.mxu0
  %v849 = vadd.f32 %v826, %v848
  %850 = vdwg.mxu0
  %851 = vmatpush.msra.mxu0 %v309
  %852 = vmatpush.msra.mxu0 %v308
  %853 = vmatpush.msra.mxu0 %v307
  %854 = vmatpush.msra.mxu0 %v306
  %855 = vmatpush.msra.mxu0 %v305
  %856 = vmatpush.msra.mxu0 %v304
  %857 = vmatpush.msra.mxu0 %v303
  %858 = vmatpush.msra.mxu0 %v302
  %859 = vmatpush.msra.mxu0 %v301
  %860 = vmatpush.msra.mxu0 %v300
  %861 = vmatpush.msra.mxu0 %v299
  %862 = vmatpush.msra.mxu0 %v298
  %863 = vmatpush.msra.mxu0 %v297
  %864 = vmatpush.msra.mxu0 %v296
  %865 = vmatpush.msra.mxu0 %v295
  %866 = vmatpush.msra.mxu0 %v294
  %867 = vmatmul.f32.gmra.mxu0 %v41
  %v868 = vpop.f32.mrf.mxu0
  %v869 = vadd.f32 %v846, %v868
  %870 = vmatmul.f32.gmra.mxu0 %v70
  %v871 = vpop.f32.mrf.mxu0
  %v872 = vadd.f32 %v849, %v871
  %873 = vdwg.mxu0
  %874 = vmatpush.msra.mxu0 %v325
  %875 = vmatpush.msra.mxu0 %v324
  %876 = vmatpush.msra.mxu0 %v323
  %877 = vmatpush.msra.mxu0 %v322
  %878 = vmatpush.msra.mxu0 %v321
  %879 = vmatpush.msra.mxu0 %v320
  %880 = vmatpush.msra.mxu0 %v319
  %881 = vmatpush.msra.mxu0 %v318
  %882 = vmatpush.msra.mxu0 %v317
  %883 = vmatpush.msra.mxu0 %v316
  %884 = vmatpush.msra.mxu0 %v315
  %885 = vmatpush.msra.mxu0 %v314
  %886 = vmatpush.msra.mxu0 %v313
  %887 = vmatpush.msra.mxu0 %v312
  %888 = vmatpush.msra.mxu0 %v311
  %889 = vmatpush.msra.mxu0 %v310
  %890 = vmatmul.f32.gmra.mxu0 %v42
  %v891 = vpop.f32.mrf.mxu0
  %v892 = vadd.f32 %v869, %v891
  %893 = vmatmul.f32.gmra.mxu0 %v71
  %v894 = vpop.f32.mrf.mxu0
  %v895 = vadd.f32 %v872, %v894
  %896 = vdwg.mxu0
  %897 = vmatpush.msra.mxu0 %v341
  %898 = vmatpush.msra.mxu0 %v340
  %899 = vmatpush.msra.mxu0 %v339
  %900 = vmatpush.msra.mxu0 %v338
  %901 = vmatpush.msra.mxu0 %v337
  %902 = vmatpush.msra.mxu0 %v336
  %903 = vmatpush.msra.mxu0 %v335
  %904 = vmatpush.msra.mxu0 %v334
  %905 = vmatpush.msra.mxu0 %v333
  %906 = vmatpush.msra.mxu0 %v332
  %907 = vmatpush.msra.mxu0 %v331
  %908 = vmatpush.msra.mxu0 %v330
  %909 = vmatpush.msra.mxu0 %v329
  %910 = vmatpush.msra.mxu0 %v328
  %911 = vmatpush.msra.mxu0 %v327
  %912 = vmatpush.msra.mxu0 %v326
  %913 = vmatmul.f32.gmra.mxu0 %v43
  %v914 = vpop.f32.mrf.mxu0
  %v915 = vadd.f32 %v892, %v914
  %916 = vmatmul.f32.gmra.mxu0 %v72
  %v917 = vpop.f32.mrf.mxu0
  %v918 = vadd.f32 %v895, %v917
  %919 = vdwg.mxu0
  %920 = vmatpush.msra.mxu0 %v357
  %921 = vmatpush.msra.mxu0 %v356
  %922 = vmatpush.msra.mxu0 %v355
  %923 = vmatpush.msra.mxu0 %v354
  %924 = vmatpush.msra.mxu0 %v353
  %925 = vmatpush.msra.mxu0 %v352
  %926 = vmatpush.msra.mxu0 %v351
  %927 = vmatpush.msra.mxu0 %v350
  %928 = vmatpush.msra.mxu0 %v349
  %929 = vmatpush.msra.mxu0 %v348
  %930 = vmatpush.msra.mxu0 %v347
  %931 = vmatpush.msra.mxu0 %v346
  %932 = vmatpush.msra.mxu0 %v345
  %933 = vmatpush.msra.mxu0 %v344
  %934 = vmatpush.msra.mxu0 %v343
  %935 = vmatpush.msra.mxu0 %v342
  %936 = vmatmul.f32.gmra.mxu0 %v44
  %v937 = vpop.f32.mrf.mxu0
  %v938 = vadd.f32 %v915, %v937
  %939 = vmatmul.f32.gmra.mxu0 %v73
  %v940 = vpop.f32.mrf.mxu0
  %v941 = vadd.f32 %v918, %v940
  %942 = vdwg.mxu0
  %943 = vmatpush.msra.mxu0 %v373
  %944 = vmatpush.msra.mxu0 %v372
  %945 = vmatpush.msra.mxu0 %v371
  %946 = vmatpush.msra.mxu0 %v370
  %947 = vmatpush.msra.mxu0 %v369
  %948 = vmatpush.msra.mxu0 %v368
  %949 = vmatpush.msra.mxu0 %v367
  %950 = vmatpush.msra.mxu0 %v366
  %951 = vmatpush.msra.mxu0 %v365
  %952 = vmatpush.msra.mxu0 %v364
  %953 = vmatpush.msra.mxu0 %v363
  %954 = vmatpush.msra.mxu0 %v362
  %955 = vmatpush.msra.mxu0 %v361
  %956 = vmatpush.msra.mxu0 %v360
  %957 = vmatpush.msra.mxu0 %v359
  %958 = vmatpush.msra.mxu0 %v358
  %959 = vmatmul.f32.gmra.mxu0 %v45
  %v960 = vpop.f32.mrf.mxu0
  %v961 = vadd.f32 %v938, %v960
  %962 = vmatmul.f32.gmra.mxu0 %v74
  %v963 = vpop.f32.mrf.mxu0
  %v964 = vadd.f32 %v941, %v963
  %965 = vdwg.mxu0
  %966 = vmatpush.msra.mxu0 %v389
  %967 = vmatpush.msra.mxu0 %v388
  %968 = vmatpush.msra.mxu0 %v387
  %969 = vmatpush.msra.mxu0 %v386
  %970 = vmatpush.msra.mxu0 %v385
  %971 = vmatpush.msra.mxu0 %v384
  %972 = vmatpush.msra.mxu0 %v383
  %973 = vmatpush.msra.mxu0 %v382
  %974 = vmatpush.msra.mxu0 %v381
  %975 = vmatpush.msra.mxu0 %v380
  %976 = vmatpush.msra.mxu0 %v379
  %977 = vmatpush.msra.mxu0 %v378
  %978 = vmatpush.msra.mxu0 %v377
  %979 = vmatpush.msra.mxu0 %v376
  %980 = vmatpush.msra.mxu0 %v375
  %981 = vmatpush.msra.mxu0 %v374
  %982 = vmatmul.f32.gmra.mxu0 %v46
  %v983 = vpop.f32.mrf.mxu0
  %v984 = vadd.f32 %v961, %v983
  %985 = vmatmul.f32.gmra.mxu0 %v75
  %v986 = vpop.f32.mrf.mxu0
  %v987 = vadd.f32 %v964, %v986
  %988 = vdwg.mxu0
  %989 = vmatpush.msra.mxu0 %v405
  %990 = vmatpush.msra.mxu0 %v404
  %991 = vmatpush.msra.mxu0 %v403
  %992 = vmatpush.msra.mxu0 %v402
  %993 = vmatpush.msra.mxu0 %v401
  %994 = vmatpush.msra.mxu0 %v400
  %995 = vmatpush.msra.mxu0 %v399
  %996 = vmatpush.msra.mxu0 %v398
  %997 = vmatpush.msra.mxu0 %v397
  %998 = vmatpush.msra.mxu0 %v396
  %999 = vmatpush.msra.mxu0 %v395
  %1000 = vmatpush.msra.mxu0 %v394
  %1001 = vmatpush.msra.mxu0 %v393
  %1002 = vmatpush.msra.mxu0 %v392
  %1003 = vmatpush.msra.mxu0 %v391
  %1004 = vmatpush.msra.mxu0 %v390
  %1005 = vmatmul.f32.gmra.mxu0 %v47
  %v1006 = vpop.f32.mrf.mxu0
  %v1007 = vadd.f32 %v984, %v1006
  %1008 = vmatmul.f32.gmra.mxu0 %v76
  %v1009 = vpop.f32.mrf.mxu0
  %v1010 = vadd.f32 %v987, %v1009
  %1011 = vdwg.mxu0
  %1012 = vmatpush.msra.mxu0 %v421
  %1013 = vmatpush.msra.mxu0 %v420
  %1014 = vmatpush.msra.mxu0 %v419
  %1015 = vmatpush.msra.mxu0 %v418
  %1016 = vmatpush.msra.mxu0 %v417
  %1017 = vmatpush.msra.mxu0 %v416
  %1018 = vmatpush.msra.mxu0 %v415
  %1019 = vmatpush.msra.mxu0 %v414
  %1020 = vmatpush.msra.mxu0 %v413
  %1021 = vmatpush.msra.mxu0 %v412
  %1022 = vmatpush.msra.mxu0 %v411
  %1023 = vmatpush.msra.mxu0 %v410
  %1024 = vmatpush.msra.mxu0 %v409
  %1025 = vmatpush.msra.mxu0 %v408
  %1026 = vmatpush.msra.mxu0 %v407
  %1027 = vmatpush.msra.mxu0 %v406
  %1028 = vmatmul.f32.gmra.mxu0 %v48
  %v1029 = vpop.f32.mrf.mxu0
  %v1030 = vadd.f32 %v1007, %v1029
  %1031 = vmatmul.f32.gmra.mxu0 %v77
  %v1032 = vpop.f32.mrf.mxu0
  %v1033 = vadd.f32 %v1010, %v1032
  %1034 = vdwg.mxu0
  %1035 = vmatpush.msra.mxu0 %v437
  %1036 = vmatpush.msra.mxu0 %v436
  %1037 = vmatpush.msra.mxu0 %v435
  %1038 = vmatpush.msra.mxu0 %v434
  %1039 = vmatpush.msra.mxu0 %v433
  %1040 = vmatpush.msra.mxu0 %v432
  %1041 = vmatpush.msra.mxu0 %v431
  %1042 = vmatpush.msra.mxu0 %v430
  %1043 = vmatpush.msra.mxu0 %v429
  %1044 = vmatpush.msra.mxu0 %v428
  %1045 = vmatpush.msra.mxu0 %v427
  %1046 = vmatpush.msra.mxu0 %v426
  %1047 = vmatpush.msra.mxu0 %v425
  %1048 = vmatpush.msra.mxu0 %v424
  %1049 = vmatpush.msra.mxu0 %v423
  %1050 = vmatpush.msra.mxu0 %v422
  %1051 = vmatmul.f32.gmra.mxu0 %v49
  %v1052 = vpop.f32.mrf.mxu0
  %v1053 = vadd.f32 %v1030, %v1052
  %1054 = vmatmul.f32.gmra.mxu0 %v78
  %v1055 = vpop.f32.mrf.mxu0
  %v1056 = vadd.f32 %v1033, %v1055
  %1057 = vdwg.mxu0
  %1058 = vmatpush.msra.mxu0 %v453
  %1059 = vmatpush.msra.mxu0 %v452
  %1060 = vmatpush.msra.mxu0 %v451
  %1061 = vmatpush.msra.mxu0 %v450
  %1062 = vmatpush.msra.mxu0 %v449
  %1063 = vmatpush.msra.mxu0 %v448
  %1064 = vmatpush.msra.mxu0 %v447
  %1065 = vmatpush.msra.mxu0 %v446
  %1066 = vmatpush.msra.mxu0 %v445
  %1067 = vmatpush.msra.mxu0 %v444
  %1068 = vmatpush.msra.mxu0 %v443
  %1069 = vmatpush.msra.mxu0 %v442
  %1070 = vmatpush.msra.mxu0 %v441
  %1071 = vmatpush.msra.mxu0 %v440
  %1072 = vmatpush.msra.mxu0 %v439
  %1073 = vmatpush.msra.mxu0 %v438
  %1074 = vmatmul.f32.gmra.mxu0 %v50
  %v1075 = vpop.f32.mrf.mxu0
  %v1076 = vadd.f32 %v1053, %v1075
  %1077 = vmatmul.f32.gmra.mxu0 %v79
  %v1078 = vpop.f32.mrf.mxu0
  %v1079 = vadd.f32 %v1056, %v1078
  %1080 = vdwg.mxu0
  %1081 = vmatpush.msra.mxu0 %v469
  %1082 = vmatpush.msra.mxu0 %v468
  %1083 = vmatpush.msra.mxu0 %v467
  %1084 = vmatpush.msra.mxu0 %v466
  %1085 = vmatpush.msra.mxu0 %v465
  %1086 = vmatpush.msra.mxu0 %v464
  %1087 = vmatpush.msra.mxu0 %v463
  %1088 = vmatpush.msra.mxu0 %v462
  %1089 = vmatpush.msra.mxu0 %v461
  %1090 = vmatpush.msra.mxu0 %v460
  %1091 = vmatpush.msra.mxu0 %v459
  %1092 = vmatpush.msra.mxu0 %v458
  %1093 = vmatpush.msra.mxu0 %v457
  %1094 = vmatpush.msra.mxu0 %v456
  %1095 = vmatpush.msra.mxu0 %v455
  %1096 = vmatpush.msra.mxu0 %v454
  %1097 = vmatmul.f32.gmra.mxu0 %v51
  %v1098 = vpop.f32.mrf.mxu0
  %v1099 = vadd.f32 %v1076, %v1098
  %1100 = vmatmul.f32.gmra.mxu0 %v80
  %v1101 = vpop.f32.mrf.mxu0
  %v1102 = vadd.f32 %v1079, %v1101
  %1103 = vdwg.mxu0
  %1104 = vmatpush.msra.mxu0 %v485
  %1105 = vmatpush.msra.mxu0 %v484
  %1106 = vmatpush.msra.mxu0 %v483
  %1107 = vmatpush.msra.mxu0 %v482
  %1108 = vmatpush.msra.mxu0 %v481
  %1109 = vmatpush.msra.mxu0 %v480
  %1110 = vmatpush.msra.mxu0 %v479
  %1111 = vmatpush.msra.mxu0 %v478
  %1112 = vmatpush.msra.mxu0 %v477
  %1113 = vmatpush.msra.mxu0 %v476
  %1114 = vmatpush.msra.mxu0 %v475
  %1115 = vmatpush.msra.mxu0 %v474
  %1116 = vmatpush.msra.mxu0 %v473
  %1117 = vmatpush.msra.mxu0 %v472
  %1118 = vmatpush.msra.mxu0 %v471
  %1119 = vmatpush.msra.mxu0 %v470
  %1120 = vmatmul.f32.gmra.mxu0 %v52
  %v1121 = vpop.f32.mrf.mxu0
  %v1122 = vadd.f32 %v1099, %v1121
  %1123 = vmatmul.f32.gmra.mxu0 %v81
  %v1124 = vpop.f32.mrf.mxu0
  %v1125 = vadd.f32 %v1102, %v1124
  %1126 = vdwg.mxu0
  %1127 = vmatpush.msra.mxu0 %v501
  %1128 = vmatpush.msra.mxu0 %v500
  %1129 = vmatpush.msra.mxu0 %v499
  %1130 = vmatpush.msra.mxu0 %v498
  %1131 = vmatpush.msra.mxu0 %v497
  %1132 = vmatpush.msra.mxu0 %v496
  %1133 = vmatpush.msra.mxu0 %v495
  %1134 = vmatpush.msra.mxu0 %v494
  %1135 = vmatpush.msra.mxu0 %v493
  %1136 = vmatpush.msra.mxu0 %v492
  %1137 = vmatpush.msra.mxu0 %v491
  %1138 = vmatpush.msra.mxu0 %v490
  %1139 = vmatpush.msra.mxu0 %v489
  %1140 = vmatpush.msra.mxu0 %v488
  %1141 = vmatpush.msra.mxu0 %v487
  %1142 = vmatpush.msra.mxu0 %v486
  %1143 = vmatmul.f32.gmra.mxu0 %v53
  %v1144 = vpop.f32.mrf.mxu0
  %v1145 = vadd.f32 %v1122, %v1144
  %1146 = vmatmul.f32.gmra.mxu0 %v82
  %v1147 = vpop.f32.mrf.mxu0
  %v1148 = vadd.f32 %v1125, %v1147
  %1149 = vdwg.mxu0
  %1150 = vmatpush.msra.mxu0 %v517
  %1151 = vmatpush.msra.mxu0 %v516
  %1152 = vmatpush.msra.mxu0 %v515
  %1153 = vmatpush.msra.mxu0 %v514
  %1154 = vmatpush.msra.mxu0 %v513
  %1155 = vmatpush.msra.mxu0 %v512
  %1156 = vmatpush.msra.mxu0 %v511
  %1157 = vmatpush.msra.mxu0 %v510
  %1158 = vmatpush.msra.mxu0 %v509
  %1159 = vmatpush.msra.mxu0 %v508
  %1160 = vmatpush.msra.mxu0 %v507
  %1161 = vmatpush.msra.mxu0 %v506
  %1162 = vmatpush.msra.mxu0 %v505
  %1163 = vmatpush.msra.mxu0 %v504
  %1164 = vmatpush.msra.mxu0 %v503
  %1165 = vmatpush.msra.mxu0 %v502
  %1166 = vmatmul.f32.gmra.mxu0 %v54
  %v1167 = vpop.f32.mrf.mxu0
  %v1168 = vadd.f32 %v1145, %v1167
  %1169 = vmatmul.f32.gmra.mxu0 %v83
  %v1170 = vpop.f32.mrf.mxu0
  %v1171 = vadd.f32 %v1148, %v1170
  %1172 = vdwg.mxu0
  %1173 = vmatpush.msra.mxu0 %v533
  %1174 = vmatpush.msra.mxu0 %v532
  %1175 = vmatpush.msra.mxu0 %v531
  %1176 = vmatpush.msra.mxu0 %v530
  %1177 = vmatpush.msra.mxu0 %v529
  %1178 = vmatpush.msra.mxu0 %v528
  %1179 = vmatpush.msra.mxu0 %v527
  %1180 = vmatpush.msra.mxu0 %v526
  %1181 = vmatpush.msra.mxu0 %v525
  %1182 = vmatpush.msra.mxu0 %v524
  %1183 = vmatpush.msra.mxu0 %v523
  %1184 = vmatpush.msra.mxu0 %v522
  %1185 = vmatpush.msra.mxu0 %v521
  %1186 = vmatpush.msra.mxu0 %v520
  %1187 = vmatpush.msra.mxu0 %v519
  %1188 = vmatpush.msra.mxu0 %v518
  %1189 = vmatmul.f32.gmra.mxu0 %v55
  %v1190 = vpop.f32.mrf.mxu0
  %v1191 = vadd.f32 %v1168, %v1190
  %1192 = vmatmul.f32.gmra.mxu0 %v84
  %v1193 = vpop.f32.mrf.mxu0
  %v1194 = vadd.f32 %v1171, %v1193
  %1195 = vdwg.mxu0
  %1196 = vmatpush.msra.mxu0 0.0
  %1197 = vmatpush.msra.mxu0 0.0
  %1198 = vmatpush.msra.mxu0 0.0
  %1199 = vmatpush.msra.mxu0 0.0
  %1200 = vmatpush.msra.mxu0 0.0
  %1201 = vmatpush.msra.mxu0 0.0
  %1202 = vmatpush.msra.mxu0 0.0
  %1203 = vmatpush.msra.mxu0 0.0
  %1204 = vmatpush.msra.mxu0 0.0
  %1205 = vmatpush.msra.mxu0 0.0
  %1206 = vmatpush.msra.mxu0 0.0
  %1207 = vmatpush.msra.mxu0 0.0
  %1208 = vmatpush.msra.mxu0 0.0
  %1209 = vmatpush.msra.mxu0 %v550
  %1210 = vmatpush.msra.mxu0 %v535
  %1211 = vmatpush.msra.mxu0 %v534
  %1212 = vmatmul.f32.gmra.mxu0 %v543
  %v1213 = vpop.f32.mrf.mxu0
  %v1214 = vadd.f32 %v1191, %v1213
  %1215 = vmatmul.f32.gmra.mxu0 %v546
  %v1216 = vpop.f32.mrf.mxu0
  %v1217 = vadd.f32 %v1194, %v1216
  %1218 = vdwg.mxu0
  %v1219 = vmax.f32 %v1214, 0.0
  %v1220 = vmax.f32 %v1217, 0.0
  %v1221 = vld [vmem:[%s3] sm:$0xff]
  %v1222 = vld [vmem:[%s3 + $0x8] sm:$0xff]
  %v1223 = vld [vmem:[%s3 + $0x10] sm:$0xff]
  %v1224 = vld [vmem:[%s3 + $0x18] sm:$0xff]
  %v1225 = vld [vmem:[%s3 + $0x20] sm:$0xff]
  %v1226 = vld [vmem:[%s3 + $0x28] sm:$0xff]
  %v1227 = vld [vmem:[%s3 + $0x30] sm:$0xff]
  %v1228 = vld [vmem:[%s3 + $0x38] sm:$0xff]
  %v1229 = vld [vmem:[%s4] sm:$0x1]
  %v1231 = vperm.slane %v1229, 0
  %vm1233 = vcmask 523264
  %v1235 = vsel %vm1233, %v1219, 0
  %v1238 = vsel %vm1233, %v1220, 0
  %1240 = vmatpush.msra.mxu0 0.0
  %1241 = vmatpush.msra.mxu0 0.0
  %1242 = vmatpush.msra.mxu0 0.0
  %1243 = vmatpush.msra.mxu0 0.0
  %1244 = vmatpush.msra.mxu0 0.0
  %1245 = vmatpush.msra.mxu0 0.0
  %1246 = vmatpush.msra.mxu0 0.0
  %1247 = vmatpush.msra.mxu0 0.0
  %1248 = vmatpush.msra.mxu0 %v1228
  %1249 = vmatpush.msra.mxu0 %v1227
  %1250 = vmatpush.msra.mxu0 %v1226
  %1251 = vmatpush.msra.mxu0 %v1225
  %1252 = vmatpush.msra.mxu0 %v1224
  %1253 = vmatpush.msra.mxu0 %v1223
  %1254 = vmatpush.msra.mxu0 %v1222
  %1255 = vmatpush.msra.mxu0 %v1221
  %1256 = vmatmul.f32.gmra.mxu0 %v1235
  %v1257 = vpop.f32.mrf.mxu0
  %v1258 = vadd.f32 %v1231, %v1257
  %1259 = vmatmul.f32.gmra.mxu0 %v1238
  %v1260 = vpop.f32.mrf.mxu0
  %v1261 = vadd.f32 %v1231, %v1260
  %1262 = vdwg.mxu0
  %v1263 = vmax.f32 %v1258, 0.0
  %v1264 = vmax.f32 %v1261, 0.0
  %v1265 = vld [vmem:[%s5] sm:$0x1]
  %v1267 = vperm.slane %v1265, 0
  %v1269 = vmul.f32 %v1263, %v1267
  %v1270 = vmul.f32 %v1264, %v1267
  %v1271 = vsel %vm1233, %v1269, 0.0
  %1272 = vadd.xlane.f32.xlu0 %v1271
  %v1273 = vpop.xlane.xlu0 %1272
  %v1274 = vsel %vm1233, %v1270, 0.0
  %1275 = vadd.xlane.f32.xlu0 %v1274
  %v1276 = vpop.xlane.xlu0 %1275
  %v1277 = vld [vmem:[#allocation2] sm:$0x1]
  %v1279 = vperm.slane %v1277, 0
  %v1281 = vadd.f32 %v1273, %v1279
  %v1282 = vadd.f32 %v1276, %v1279
  %v1283 = vmax.f32 %v1281, 0.0
  %v1284 = vmax.f32 %v1282, 0.0
  %v1285 = vxor.u32 %v1283, 2147483648
  %v1286 = vxor.u32 %v1284, 2147483648
  %v1287 = vmul.f32 %v1285, 1.442695
  %v1288 = vpow.pop %v1287
  %v1289 = vmul.f32 %v1286, 1.442695
  %v1290 = vpow.pop %v1289
  %v1291 = vadd.f32 %v1288, 1.0
  %v1292 = vadd.f32 %v1290, 1.0
  %v1293 = vrcp.pop %v1291
  %v1294 = vmul.f32 %v1291, %v1293
  %v1295 = vsub.f32 1.0, %v1294
  %v1296 = vmul.f32 %v1293, %v1295
  %v1297 = vadd.f32 %v1293, %v1296
  %vm1298 = vweird.f32 %v1291
  %vm1299 = vweird.f32 %v1293
  %vm1300 = vmor %vm1298, %vm1299
  %v1301 = vsel %vm1300, %v1293, %v1297
  %v1302 = vand.u32 2147483647, %v1291
  %vm1303 = vcmp.eq.f32.partialorder %v1302, 8.507059e+37
  %v1304 = vand.u32 %v1291, 2147483648
  %v1305 = vor.u32 1.1754944e-38, %v1304
  %v1306 = vsel %vm1303, %v1305, %v1301
  %v1307 = vmul.f32 1.0, %v1306
  %v1308 = vrcp.pop %v1292
  %v1309 = vmul.f32 %v1292, %v1308
  %v1310 = vsub.f32 1.0, %v1309
  %v1311 = vmul.f32 %v1308, %v1310
  %v1312 = vadd.f32 %v1308, %v1311
  %vm1313 = vweird.f32 %v1292
  %vm1314 = vweird.f32 %v1308
  %vm1315 = vmor %vm1313, %vm1314
  %v1316 = vsel %vm1315, %v1308, %v1312
  %v1317 = vand.u32 2147483647, %v1292
  %vm1318 = vcmp.eq.f32.partialorder %v1317, 8.507059e+37
  %v1319 = vand.u32 %v1292, 2147483648
  %v1320 = vor.u32 1.1754944e-38, %v1319
  %v1321 = vsel %vm1318, %v1320, %v1316
  %v1322 = vmul.f32 1.0, %v1321
  %vm1323 = vcmask 7168
  %1324 = vst.msk [vmem:[%s7] sm:$0xff] %vm1323, %v1307
  %1325 = vst.msk [vmem:[%s7 + $0x8] sm:$0xff] %vm1323, %v1322
  // Predicated region
  $region30: #{tpu_custom_call.1} parent=0 // pred_check
    _
  $region31: #{tpu_custom_call.1} parent=0 // pred_check_branch
    %1327 = sbr.rel (0) target = $region33
  $region32: #{tpu_custom_call.1} parent=0 // pred_region
    _
  $region33: #{tpu_custom_call.1} parent=0 // pred_fallthru
    _
  // Predicated region
  $region34: #{tpu_custom_call.1} parent=0 // pred_check
    _
  $region35: #{tpu_custom_call.1} parent=0 // pred_check_branch
    %1329 = sbr.rel (0) target = $region37
  $region36: #{tpu_custom_call.1} parent=0 // pred_region
    _
  $region37: #{tpu_custom_call.1} parent=0 // pred_fallthru
    _

</llo_original>
